<compile_context>
chip_gen: v5e
topology: v5e:2x2
jax: 0.10.0
libtpu: 0.0.40
codegen_flags: <defaults>
</compile_context>

<pallas_src>
import functools

import jax
import jax.numpy as jnp
import numpy as np
from jax import lax
from jax.experimental import pallas as pl
from jax.experimental.pallas import tpu as pltpu


# ----------------------------------------------------------------------------
# Fused kernel: 5 conv+ReLU layers + optional 2x2 maxpool, one batch tile per step.
# ----------------------------------------------------------------------------
def _enc_conv_kernel(*refs, reduce, img_h, c_out):
    if reduce:
        x_ref, w1_ref, wmid_ref, w5_ref, qsel_ref, re_ref, ro_ref, o_ref = refs
    else:
        x_ref, w1_ref, wmid_ref, w5_ref, o_ref = refs

    a = x_ref[...].astype(jnp.float32)                      # (M, W*Cin_p), M = B_tile*H
    M = a.shape[0]

    # Per-image row index for the replication-pad clamp (images are stacked along M).
    row = lax.broadcasted_iota(jnp.int32, (M, 1), 0)
    if img_h & (img_h - 1) == 0:                            # power-of-two fast path
        h = jnp.bitwise_and(row, img_h - 1)
    else:
        h = lax.rem(row, img_h)
    is_top = h == 0
    is_bot = h == img_h - 1

    def conv_relu(act, w):
        # ky = 0 / 1 / 2 taps via sublane rolls + edge clamp (XLU/VPU, no MXU).
        up = jnp.where(is_top, act, pltpu.roll(act, shift=1, axis=0))       # row h-1
        dn = jnp.where(is_bot, act, pltpu.roll(act, shift=M - 1, axis=0))   # row h+1
        a3 = jnp.concatenate([up, act, dn], axis=1).astype(w.dtype)         # (M, 3*W*C)
        y = jnp.dot(a3, w, preferred_element_type=jnp.float32)              # one fat dot
        return jnp.maximum(y, 0.0)                                          # ReLU (f32)

    a = conv_relu(a, w1_ref[...])
    for l in range(3):
        a = conv_relu(a, wmid_ref[l])
    a = conv_relu(a, w5_ref[...])                           # (M, W*Cout)

    if reduce:                                              # fused MaxPool2d(2)
        n = a.shape[1]
        # Row-phase max (valid at even h) and column-phase max (valid at even w):
        rm = jnp.maximum(a, pltpu.roll(a, shift=M - 1, axis=0))          # rows h,h+1
        cm = jnp.maximum(rm, pltpu.roll(rm, shift=n - c_out, axis=1))    # cols w,w+1
        # Lane down-select (even w), then row down-select packing image pairs along
        # lanes so the stored slab is 2*Wo*Cout = 128 lanes wide (lane-dense store).
        sel = jnp.dot(cm, qsel_ref[...], preferred_element_type=jnp.float32)
        ev = jnp.dot(re_ref[...], sel, preferred_element_type=jnp.float32)
        od = jnp.dot(ro_ref[...], sel, preferred_element_type=jnp.float32)
        a = jnp.concatenate([ev, od], axis=1)               # (B_tile/2*Ho, 2*Wo*Cout)

    o_ref[...] = a.astype(o_ref.dtype)


# ----------------------------------------------------------------------------
# Host-side structured-constant builders (numpy, built once per trace).
# ----------------------------------------------------------------------------
def _fold_conv_weight(w_oihw, W, cin_pad, dtype):
    """Fold a replication-padded 3x3 conv into one (3*W*cin_pad, W*cout) matrix.
    Row blocks are ordered ky=0 (row h-1), ky=1 (row h), ky=2 (row h+1) to match
    the in-kernel concat([up, mid, down], axis=1)."""
    w = np.asarray(w_oihw, np.float32)                      # (Cout, Cin, 3, 3)
    cout, cin = w.shape[0], w.shape[1]
    if cin_pad > cin:
        w = np.pad(w, ((0, 0), (0, cin_pad - cin), (0, 0), (0, 0)))
    blocks = []
    for ky in range(3):
        acc = np.zeros((W * cin_pad, W * cout), np.float32)
        for kx in range(3):
            src = np.clip(np.arange(W) + kx - 1, 0, W - 1)  # kx shift + edge clamp
            m = np.zeros((W, W), np.float32)
            m[src, np.arange(W)] = 1.0
            acc += np.kron(m, w[:, :, ky, kx].T)
        blocks.append(acc)
    return jnp.asarray(np.concatenate(blocks, axis=0), dtype)


def _pool_constants(H, W, c_out, bt):
    """Column (even-w) selector and even/odd-image row selectors for the fused pool."""
    Ho, Wo = H // 2, W // 2
    colsel = np.zeros((W, Wo), np.float32)
    colsel[2 * np.arange(Wo), np.arange(Wo)] = 1.0
    qsel = np.kron(colsel, np.eye(c_out, dtype=np.float32))       # (W*Cout, Wo*Cout)
    b2 = bt // 2
    re = np.zeros((b2 * Ho, bt * H), np.float32)
    ro = np.zeros_like(re)
    for k in range(b2):
        re[k * Ho + np.arange(Ho), (2 * k) * H + 2 * np.arange(Ho)] = 1.0
        ro[k * Ho + np.arange(Ho), (2 * k + 1) * H + 2 * np.arange(Ho)] = 1.0
    return jnp.asarray(qsel), jnp.asarray(re), jnp.asarray(ro)


# ----------------------------------------------------------------------------
# ENC_Conv forward factory (NCHW in / NCHW out, like the PyTorch module).
# ----------------------------------------------------------------------------
def init_enc_conv_params(key, in_ch, mid_ch, out_ch):
    shapes = [
        (mid_ch, in_ch, 3, 3),
        (mid_ch, mid_ch, 3, 3),
        (mid_ch, mid_ch, 3, 3),
        (mid_ch, mid_ch, 3, 3),
        (out_ch, mid_ch, 3, 3),
    ]
    keys = jax.random.split(key, len(shapes))
    params = []
    for k, s in zip(keys, shapes):
        fan_in = s[1] * s[2] * s[3]
        params.append(jax.random.normal(k, s, jnp.float32) / np.sqrt(fan_in))
    return params


def make_enc_conv(params, *, reduce=True, compute_dtype=jnp.bfloat16, b_tile=8):
    """Fold the conv weights once (host) and return a jitted NCHW->NCHW forward."""
    params_np = [np.asarray(p, np.float32) for p in params]
    c_in = params_np[0].shape[1]
    c_mid = params_np[0].shape[0]
    c_out = params_np[-1].shape[0]

    @jax.jit
    def forward(x_nchw):
        B, Cin, H, W = x_nchw.shape
        assert Cin == c_in, (Cin, c_in)

        # Batch tile: fold B_tile images into the sublane (M) axis (even for pooling).
        bt = min(b_tile, B)
        if reduce and bt % 2:
            bt += 1
        B_pad = -(-B // bt) * bt
        T = B_pad // bt
        Ho, Wo = (H // 2, W // 2) if reduce else (H, W)

        # Pad input channels so W*Cin_p is lane-dense (multiple of 128) when possible.
        cin_p = c_in
        if (W * cin_p) % 128:
            for cand in range(c_in, c_in + 129):
                if (W * cand) % 128 == 0:
                    cin_p = cand
                    break

        # Fold weights (trace-time host constants; ky stacked along K).
        w1 = _fold_conv_weight(params_np[0], W, cin_p, compute_dtype)
        wmid = jnp.stack([_fold_conv_weight(params_np[i], W, c_mid, compute_dtype)
                          for i in (1, 2, 3)])              # coalesced constant operand
        w5 = _fold_conv_weight(params_np[4], W, c_mid, compute_dtype)

        # NCHW -> (B_pad*H, W*Cin_p): batch*H on sublanes, W*C on lanes.
        x = jnp.transpose(x_nchw, (0, 2, 3, 1))
        if cin_p > c_in:
            x = jnp.pad(x, ((0, 0), (0, 0), (0, 0), (0, cin_p - c_in)))
        if B_pad > B:
            x = jnp.pad(x, ((0, B_pad - B), (0, 0), (0, 0), (0, 0)))
        x2d = x.reshape(B_pad * H, W * cin_p)

        kern = functools.partial(_enc_conv_kernel, reduce=reduce, img_h=H, c_out=c_out)
        const2 = lambda t: (0, 0)
        const3 = lambda t: (0, 0, 0)

        in_specs = [pl.BlockSpec((bt * H, W * cin_p), lambda t: (t, 0)),
                    pl.BlockSpec(w1.shape, const2),
                    pl.BlockSpec(wmid.shape, const3),
                    pl.BlockSpec(w5.shape, const2)]
        operands = [x2d, w1, wmid, w5]

        if reduce:
            qsel, re, ro = _pool_constants(H, W, c_out, bt)
            in_specs += [pl.BlockSpec(qsel.shape, const2),
                         pl.BlockSpec(re.shape, const2),
                         pl.BlockSpec(ro.shape, const2)]
            operands += [qsel, re, ro]
            out_shape = jax.ShapeDtypeStruct(
                (T * (bt // 2) * Ho, 2 * Wo * c_out), x_nchw.dtype)
            out_spec = pl.BlockSpec(((bt // 2) * Ho, 2 * Wo * c_out), lambda t: (t, 0))
        else:
            out_shape = jax.ShapeDtypeStruct((B_pad * H, W * c_out), x_nchw.dtype)
            out_spec = pl.BlockSpec((bt * H, W * c_out), lambda t: (t, 0))

        out2d = pl.pallas_call(
            kern,
            out_shape=out_shape,
            grid=(T,),
            in_specs=in_specs,
            out_specs=out_spec,
            compiler_params=pltpu.CompilerParams(
                dimension_semantics=("parallel",)),          # v7x megacore over tiles
        )(*operands)

        if reduce:
            # Un-pack the image pairs interleaved along lanes: lane half 0 = image 2g,
            # lane half 1 = image 2g+1.
            o = out2d.reshape(B_pad // 2, Ho, 2, Wo, c_out)
            o = jnp.transpose(o, (0, 2, 1, 3, 4)).reshape(B_pad, Ho, Wo, c_out)
        else:
            o = out2d.reshape(B_pad, H, W, c_out)
        return jnp.transpose(o[:B], (0, 3, 1, 2))            # NHWC -> NCHW

    return forward


# ----------------------------------------------------------------------------
# Pure-JAX reference (mirrors the PyTorch forward) for correctness checks.
# ----------------------------------------------------------------------------
def enc_conv_reference(x_nchw, params, reduce=True):
    x = x_nchw
    for w in params:
        xp = jnp.pad(x, ((0, 0), (0, 0), (1, 1), (1, 1)), mode="edge")
        x = lax.conv_general_dilated(
            xp, w, window_strides=(1, 1), padding="VALID",
            dimension_numbers=("NCHW", "OIHW", "NCHW"))
        x = jnp.maximum(x, 0.0)
    if reduce:
        x = lax.reduce_window(x, -jnp.inf, lax.max,
                              (1, 1, 2, 2), (1, 1, 2, 2), "VALID")
    return x


if __name__ == "__main__":
    key = jax.random.PRNGKey(0)
    kx, kp = jax.random.split(key)

    in_ch, mid_ch, out_ch = 4, 8, 8
    B, H, W = 16, 16, 16                                     # 2 batch tiles of 8
    x = jax.random.normal(kx, (B, in_ch, H, W), jnp.float32)  # NCHW input
    params = init_enc_conv_params(kp, in_ch, mid_ch, out_ch)

    ref = jax.block_until_ready(enc_conv_reference(x, params, reduce=True))

    # f32 compute path: tight structural check against the reference.
    out_f32 = jax.block_until_ready(
        make_enc_conv(params, reduce=True, compute_dtype=jnp.float32)(x))
    assert out_f32.shape == (B, out_ch, H // 2, W // 2), out_f32.shape
    np.testing.assert_allclose(np.asarray(out_f32), np.asarray(ref),
                               rtol=3e-3, atol=3e-3)

    # Default bf16-operand / f32-accumulate path (perf config): loose check.
    out_bf16 = jax.block_until_ready(make_enc_conv(params, reduce=True)(x))
    np.testing.assert_allclose(np.asarray(out_bf16), np.asarray(ref),
                               rtol=1e-1, atol=1e-1)

    # reduce=False path.
    ref_nr = jax.block_until_ready(enc_conv_reference(x, params, reduce=False))
    out_nr = jax.block_until_ready(
        make_enc_conv(params, reduce=False, compute_dtype=jnp.float32)(x))
    assert out_nr.shape == (B, out_ch, H, W), out_nr.shape
    np.testing.assert_allclose(np.asarray(out_nr), np.asarray(ref_nr),
                               rtol=3e-3, atol=3e-3)

    print("KERNEL_OK")
</pallas_src>

<mosaic_0001>
module attributes {stable_mosaic.version = 11 : i64} {
  func.func @_enc_conv_kernel(%arg0: i32, %arg1: memref<128x128xf32, #tpu.memory_space<vmem>>, %arg2: memref<384x128xf32, #tpu.memory_space<vmem>>, %arg3: memref<3x384x128xf32, #tpu.memory_space<vmem>>, %arg4: memref<384x128xf32, #tpu.memory_space<vmem>>, %arg5: memref<128x64xf32, #tpu.memory_space<vmem>>, %arg6: memref<32x128xf32, #tpu.memory_space<vmem>>, %arg7: memref<32x128xf32, #tpu.memory_space<vmem>>, %arg8: memref<32x128xf32, #tpu.memory_space<vmem>>) attributes {dimension_semantics = [#tpu.dimension_semantics<parallel>], iteration_bounds = array<i64: 2>, scalar_prefetch = 0 : i64, scratch_operands = 0 : i64, tpu.core_type = #tpu.core_type<tc>, window_params = [{transform_indices = @transform_0, window_bounds = array<i64: 128, 128>}, {pipeline_mode = #tpu.pipeline_mode<synchronous>, transform_indices = @transform_1, window_bounds = array<i64: 384, 128>}, {pipeline_mode = #tpu.pipeline_mode<synchronous>, transform_indices = @transform_2, window_bounds = array<i64: 3, 384, 128>}, {pipeline_mode = #tpu.pipeline_mode<synchronous>, transform_indices = @transform_3, window_bounds = array<i64: 384, 128>}, {pipeline_mode = #tpu.pipeline_mode<synchronous>, transform_indices = @transform_4, window_bounds = array<i64: 128, 64>}, {pipeline_mode = #tpu.pipeline_mode<synchronous>, transform_indices = @transform_5, window_bounds = array<i64: 32, 128>}, {pipeline_mode = #tpu.pipeline_mode<synchronous>, transform_indices = @transform_6, window_bounds = array<i64: 32, 128>}, {transform_indices = @transform_7, window_bounds = array<i64: 32, 128>}]} {
    %c0 = arith.constant 0 : index
    %c0_0 = arith.constant 0 : index
    %0 = vector.load %arg1[%c0, %c0_0] : memref<128x128xf32, #tpu.memory_space<vmem>>, vector<128x128xf32>
    %1 = tpu.iota {dimensions = array<i32: 0>} : vector<128x1xi32>
    %c15_i32 = arith.constant 15 : i32
    %2 = vector.broadcast %c15_i32 : i32 to vector<128x1xi32>
    %3 = arith.andi %1, %2 : vector<128x1xi32>
    %c0_i32 = arith.constant 0 : i32
    %4 = vector.broadcast %c0_i32 : i32 to vector<128x1xi32>
    %5 = arith.cmpi eq, %3, %4 : vector<128x1xi32>
    %c15_i32_1 = arith.constant 15 : i32
    %6 = vector.broadcast %c15_i32_1 : i32 to vector<128x1xi32>
    %7 = arith.cmpi eq, %3, %6 : vector<128x1xi32>
    %c0_2 = arith.constant 0 : index
    %c0_3 = arith.constant 0 : index
    %8 = vector.load %arg2[%c0_2, %c0_3] : memref<384x128xf32, #tpu.memory_space<vmem>>, vector<384x128xf32>
    %c1_i32 = arith.constant 1 : i32
    %9 = tpu.dynamic_rotate %0 by %c1_i32 dim 0 : vector<128x128xf32>, i32 -> vector<128x128xf32>
    %10 = vector.shape_cast %5 : vector<128x1xi1> to vector<128x1xi1>
    %11 = vector.broadcast %10 : vector<128x1xi1> to vector<128x128xi1>
    %12 = arith.select %11, %0, %9 : vector<128x128xi1>, vector<128x128xf32>
    %c127_i32 = arith.constant 127 : i32
    %13 = tpu.dynamic_rotate %0 by %c127_i32 dim 0 : vector<128x128xf32>, i32 -> vector<128x128xf32>
    %14 = vector.shape_cast %7 : vector<128x1xi1> to vector<128x1xi1>
    %15 = vector.broadcast %14 : vector<128x1xi1> to vector<128x128xi1>
    %16 = arith.select %15, %0, %13 : vector<128x128xi1>, vector<128x128xf32>
    %17 = tpu.concatenate %12, %0, %16 in 1 : vector<128x128xf32>, vector<128x128xf32>, vector<128x128xf32> -> vector<128x384xf32>
    %cst = arith.constant dense<0.000000e+00> : vector<128x128xf32>
    %18 = tpu.matmul %17, %8, %cst {dimension_numbers = #tpu.dot_dimension_numbers<[1], [0], [0], [1], [0, 0, 1, 1], [], []>} : vector<128x384xf32>, vector<384x128xf32>, vector<128x128xf32> -> vector<128x128xf32>
    %cst_4 = arith.constant 0.000000e+00 : f32
    %19 = vector.broadcast %cst_4 : f32 to vector<128x128xf32>
    %20 = arith.maximumf %18, %19 : vector<128x128xf32>
    %c0_5 = arith.constant 0 : index
    %c0_6 = arith.constant 0 : index
    %c0_7 = arith.constant 0 : index
    %21 = vector.load %arg3[%c0_5, %c0_6, %c0_7] : memref<3x384x128xf32, #tpu.memory_space<vmem>>, vector<1x384x128xf32>
    %22 = vector.shape_cast %21 : vector<1x384x128xf32> to vector<384x128xf32>
    %c1_i32_8 = arith.constant 1 : i32
    %23 = tpu.dynamic_rotate %20 by %c1_i32_8 dim 0 : vector<128x128xf32>, i32 -> vector<128x128xf32>
    %24 = vector.shape_cast %5 : vector<128x1xi1> to vector<128x1xi1>
    %25 = vector.broadcast %24 : vector<128x1xi1> to vector<128x128xi1>
    %26 = arith.select %25, %20, %23 : vector<128x128xi1>, vector<128x128xf32>
    %c127_i32_9 = arith.constant 127 : i32
    %27 = tpu.dynamic_rotate %20 by %c127_i32_9 dim 0 : vector<128x128xf32>, i32 -> vector<128x128xf32>
    %28 = vector.shape_cast %7 : vector<128x1xi1> to vector<128x1xi1>
    %29 = vector.broadcast %28 : vector<128x1xi1> to vector<128x128xi1>
    %30 = arith.select %29, %20, %27 : vector<128x128xi1>, vector<128x128xf32>
    %31 = tpu.concatenate %26, %20, %30 in 1 : vector<128x128xf32>, vector<128x128xf32>, vector<128x128xf32> -> vector<128x384xf32>
    %cst_10 = arith.constant dense<0.000000e+00> : vector<128x128xf32>
    %32 = tpu.matmul %31, %22, %cst_10 {dimension_numbers = #tpu.dot_dimension_numbers<[1], [0], [0], [1], [0, 0, 1, 1], [], []>} : vector<128x384xf32>, vector<384x128xf32>, vector<128x128xf32> -> vector<128x128xf32>
    %cst_11 = arith.constant 0.000000e+00 : f32
    %33 = vector.broadcast %cst_11 : f32 to vector<128x128xf32>
    %34 = arith.maximumf %32, %33 : vector<128x128xf32>
    %c1 = arith.constant 1 : index
    %c0_12 = arith.constant 0 : index
    %c0_13 = arith.constant 0 : index
    %35 = vector.load %arg3[%c1, %c0_12, %c0_13] : memref<3x384x128xf32, #tpu.memory_space<vmem>>, vector<1x384x128xf32>
    %36 = vector.shape_cast %35 : vector<1x384x128xf32> to vector<384x128xf32>
    %c1_i32_14 = arith.constant 1 : i32
    %37 = tpu.dynamic_rotate %34 by %c1_i32_14 dim 0 : vector<128x128xf32>, i32 -> vector<128x128xf32>
    %38 = vector.shape_cast %5 : vector<128x1xi1> to vector<128x1xi1>
    %39 = vector.broadcast %38 : vector<128x1xi1> to vector<128x128xi1>
    %40 = arith.select %39, %34, %37 : vector<128x128xi1>, vector<128x128xf32>
    %c127_i32_15 = arith.constant 127 : i32
    %41 = tpu.dynamic_rotate %34 by %c127_i32_15 dim 0 : vector<128x128xf32>, i32 -> vector<128x128xf32>
    %42 = vector.shape_cast %7 : vector<128x1xi1> to vector<128x1xi1>
    %43 = vector.broadcast %42 : vector<128x1xi1> to vector<128x128xi1>
    %44 = arith.select %43, %34, %41 : vector<128x128xi1>, vector<128x128xf32>
    %45 = tpu.concatenate %40, %34, %44 in 1 : vector<128x128xf32>, vector<128x128xf32>, vector<128x128xf32> -> vector<128x384xf32>
    %cst_16 = arith.constant dense<0.000000e+00> : vector<128x128xf32>
    %46 = tpu.matmul %45, %36, %cst_16 {dimension_numbers = #tpu.dot_dimension_numbers<[1], [0], [0], [1], [0, 0, 1, 1], [], []>} : vector<128x384xf32>, vector<384x128xf32>, vector<128x128xf32> -> vector<128x128xf32>
    %cst_17 = arith.constant 0.000000e+00 : f32
    %47 = vector.broadcast %cst_17 : f32 to vector<128x128xf32>
    %48 = arith.maximumf %46, %47 : vector<128x128xf32>
    %c2 = arith.constant 2 : index
    %c0_18 = arith.constant 0 : index
    %c0_19 = arith.constant 0 : index
    %49 = vector.load %arg3[%c2, %c0_18, %c0_19] : memref<3x384x128xf32, #tpu.memory_space<vmem>>, vector<1x384x128xf32>
    %50 = vector.shape_cast %49 : vector<1x384x128xf32> to vector<384x128xf32>
    %c1_i32_20 = arith.constant 1 : i32
    %51 = tpu.dynamic_rotate %48 by %c1_i32_20 dim 0 : vector<128x128xf32>, i32 -> vector<128x128xf32>
    %52 = vector.shape_cast %5 : vector<128x1xi1> to vector<128x1xi1>
    %53 = vector.broadcast %52 : vector<128x1xi1> to vector<128x128xi1>
    %54 = arith.select %53, %48, %51 : vector<128x128xi1>, vector<128x128xf32>
    %c127_i32_21 = arith.constant 127 : i32
    %55 = tpu.dynamic_rotate %48 by %c127_i32_21 dim 0 : vector<128x128xf32>, i32 -> vector<128x128xf32>
    %56 = vector.shape_cast %7 : vector<128x1xi1> to vector<128x1xi1>
    %57 = vector.broadcast %56 : vector<128x1xi1> to vector<128x128xi1>
    %58 = arith.select %57, %48, %55 : vector<128x128xi1>, vector<128x128xf32>
    %59 = tpu.concatenate %54, %48, %58 in 1 : vector<128x128xf32>, vector<128x128xf32>, vector<128x128xf32> -> vector<128x384xf32>
    %cst_22 = arith.constant dense<0.000000e+00> : vector<128x128xf32>
    %60 = tpu.matmul %59, %50, %cst_22 {dimension_numbers = #tpu.dot_dimension_numbers<[1], [0], [0], [1], [0, 0, 1, 1], [], []>} : vector<128x384xf32>, vector<384x128xf32>, vector<128x128xf32> -> vector<128x128xf32>
    %cst_23 = arith.constant 0.000000e+00 : f32
    %61 = vector.broadcast %cst_23 : f32 to vector<128x128xf32>
    %62 = arith.maximumf %60, %61 : vector<128x128xf32>
    %c0_24 = arith.constant 0 : index
    %c0_25 = arith.constant 0 : index
    %63 = vector.load %arg4[%c0_24, %c0_25] : memref<384x128xf32, #tpu.memory_space<vmem>>, vector<384x128xf32>
    %c1_i32_26 = arith.constant 1 : i32
    %64 = tpu.dynamic_rotate %62 by %c1_i32_26 dim 0 : vector<128x128xf32>, i32 -> vector<128x128xf32>
    %65 = vector.shape_cast %5 : vector<128x1xi1> to vector<128x1xi1>
    %66 = vector.broadcast %65 : vector<128x1xi1> to vector<128x128xi1>
    %67 = arith.select %66, %62, %64 : vector<128x128xi1>, vector<128x128xf32>
    %c127_i32_27 = arith.constant 127 : i32
    %68 = tpu.dynamic_rotate %62 by %c127_i32_27 dim 0 : vector<128x128xf32>, i32 -> vector<128x128xf32>
    %69 = vector.shape_cast %7 : vector<128x1xi1> to vector<128x1xi1>
    %70 = vector.broadcast %69 : vector<128x1xi1> to vector<128x128xi1>
    %71 = arith.select %70, %62, %68 : vector<128x128xi1>, vector<128x128xf32>
    %72 = tpu.concatenate %67, %62, %71 in 1 : vector<128x128xf32>, vector<128x128xf32>, vector<128x128xf32> -> vector<128x384xf32>
    %cst_28 = arith.constant dense<0.000000e+00> : vector<128x128xf32>
    %73 = tpu.matmul %72, %63, %cst_28 {dimension_numbers = #tpu.dot_dimension_numbers<[1], [0], [0], [1], [0, 0, 1, 1], [], []>} : vector<128x384xf32>, vector<384x128xf32>, vector<128x128xf32> -> vector<128x128xf32>
    %cst_29 = arith.constant 0.000000e+00 : f32
    %74 = vector.broadcast %cst_29 : f32 to vector<128x128xf32>
    %75 = arith.maximumf %73, %74 : vector<128x128xf32>
    %c127_i32_30 = arith.constant 127 : i32
    %76 = tpu.dynamic_rotate %75 by %c127_i32_30 dim 0 : vector<128x128xf32>, i32 -> vector<128x128xf32>
    %77 = arith.maximumf %75, %76 : vector<128x128xf32>
    %c120_i32 = arith.constant 120 : i32
    %78 = tpu.dynamic_rotate %77 by %c120_i32 dim 1 : vector<128x128xf32>, i32 -> vector<128x128xf32>
    %79 = arith.maximumf %77, %78 : vector<128x128xf32>
    %c0_31 = arith.constant 0 : index
    %c0_32 = arith.constant 0 : index
    %80 = vector.load %arg5[%c0_31, %c0_32] : memref<128x64xf32, #tpu.memory_space<vmem>>, vector<128x64xf32>
    %cst_33 = arith.constant dense<0.000000e+00> : vector<128x64xf32>
    %81 = tpu.matmul %79, %80, %cst_33 {dimension_numbers = #tpu.dot_dimension_numbers<[1], [0], [0], [1], [0, 0, 1, 1], [], []>} : vector<128x128xf32>, vector<128x64xf32>, vector<128x64xf32> -> vector<128x64xf32>
    %c0_34 = arith.constant 0 : index
    %c0_35 = arith.constant 0 : index
    %82 = vector.load %arg6[%c0_34, %c0_35] : memref<32x128xf32, #tpu.memory_space<vmem>>, vector<32x128xf32>
    %cst_36 = arith.constant dense<0.000000e+00> : vector<32x64xf32>
    %83 = tpu.matmul %82, %81, %cst_36 {dimension_numbers = #tpu.dot_dimension_numbers<[1], [0], [0], [1], [0, 0, 1, 1], [], []>} : vector<32x128xf32>, vector<128x64xf32>, vector<32x64xf32> -> vector<32x64xf32>
    %c0_37 = arith.constant 0 : index
    %c0_38 = arith.constant 0 : index
    %84 = vector.load %arg7[%c0_37, %c0_38] : memref<32x128xf32, #tpu.memory_space<vmem>>, vector<32x128xf32>
    %cst_39 = arith.constant dense<0.000000e+00> : vector<32x64xf32>
    %85 = tpu.matmul %84, %81, %cst_39 {dimension_numbers = #tpu.dot_dimension_numbers<[1], [0], [0], [1], [0, 0, 1, 1], [], []>} : vector<32x128xf32>, vector<128x64xf32>, vector<32x64xf32> -> vector<32x64xf32>
    %86 = tpu.concatenate %83, %85 in 1 : vector<32x64xf32>, vector<32x64xf32> -> vector<32x128xf32>
    %c0_40 = arith.constant 0 : index
    %c0_41 = arith.constant 0 : index
    %87 = vector.load %arg8[%c0_40, %c0_41] : memref<32x128xf32, #tpu.memory_space<vmem>>, vector<32x128xf32>
    tpu.vector_store %arg8[%c0_40, %c0_41], %86 {strides = array<i32>} : memref<32x128xf32, #tpu.memory_space<vmem>>, vector<32x128xf32>,
    return
  }
  func.func @transform_0(%arg0: i32) -> (i32, i32) {
    %c0_i32 = arith.constant 0 : i32
    %c0_i32_0 = arith.constant 0 : i32
    return %arg0, %c0_i32 : i32, i32
  }
  func.func @transform_1(%arg0: i32) -> (i32, i32) {
    %c0_i32 = arith.constant 0 : i32
    %c0_i32_0 = arith.constant 0 : i32
    %c0_i32_1 = arith.constant 0 : i32
    return %c0_i32, %c0_i32_0 : i32, i32
  }
  func.func @transform_2(%arg0: i32) -> (i32, i32, i32) {
    %c0_i32 = arith.constant 0 : i32
    %c0_i32_0 = arith.constant 0 : i32
    %c0_i32_1 = arith.constant 0 : i32
    %c0_i32_2 = arith.constant 0 : i32
    return %c0_i32, %c0_i32_0, %c0_i32_1 : i32, i32, i32
  }
  func.func @transform_3(%arg0: i32) -> (i32, i32) {
    %c0_i32 = arith.constant 0 : i32
    %c0_i32_0 = arith.constant 0 : i32
    %c0_i32_1 = arith.constant 0 : i32
    return %c0_i32, %c0_i32_0 : i32, i32
  }
  func.func @transform_4(%arg0: i32) -> (i32, i32) {
    %c0_i32 = arith.constant 0 : i32
    %c0_i32_0 = arith.constant 0 : i32
    %c0_i32_1 = arith.constant 0 : i32
    return %c0_i32, %c0_i32_0 : i32, i32
  }
  func.func @transform_5(%arg0: i32) -> (i32, i32) {
    %c0_i32 = arith.constant 0 : i32
    %c0_i32_0 = arith.constant 0 : i32
    %c0_i32_1 = arith.constant 0 : i32
    return %c0_i32, %c0_i32_0 : i32, i32
  }
  func.func @transform_6(%arg0: i32) -> (i32, i32) {
    %c0_i32 = arith.constant 0 : i32
    %c0_i32_0 = arith.constant 0 : i32
    %c0_i32_1 = arith.constant 0 : i32
    return %c0_i32, %c0_i32_0 : i32, i32
  }
  func.func @transform_7(%arg0: i32) -> (i32, i32) {
    %c0_i32 = arith.constant 0 : i32
    %c0_i32_0 = arith.constant 0 : i32
    return %arg0, %c0_i32 : i32, i32
  }
}

</mosaic_0001>

<llo_original>
// kernel: forward.1
$region0: #{forward.1}
  #allocation0 [shape = 'u32[]', space=smem, size = 0x4, offset = 0x4, fixed_abs, tag = 'smem constant byte address 0x4 - core index']
  #allocation1 [shape = 'u32[72,128]{1,0:T(1,128)}', space=vmem, size = 0x9000, scoped, tag = 'internal scratch']
  %s0 = inlined_call_operand.vmem [shape: f32[256,128], index: 0, kind: input, shape index: {}]
  %s1 = inlined_call_operand.vmem [shape: f32[384,128], index: 1, kind: input, shape index: {}]
  %s2 = inlined_call_operand.vmem [shape: f32[3,384,128], index: 2, kind: input, shape index: {}]
  %s3 = inlined_call_operand.vmem [shape: f32[384,128], index: 3, kind: input, shape index: {}]
  %s4 = inlined_call_operand.vmem [shape: f32[128,64], index: 4, kind: input, shape index: {}]
  %s5 = inlined_call_operand.vmem [shape: f32[32,128], index: 5, kind: input, shape index: {}]
  %s6 = inlined_call_operand.vmem [shape: f32[32,128], index: 6, kind: input, shape index: {}]
  %s7 = inlined_call_operand.vmem [shape: f32[64,128], index: 7, kind: output, shape index: {}]
  %s8 = sld [smem:[#allocation0]]
  $region61: #{forward.1} parent=0
    _
  %s10 = ssub.s32 1, %s8
  %s11 = scalar_select 0, %s10, %s8
  loop: start=0, step=1, limit=4
  $region2: #{forward.1} parent=0 // loop_pre_header
    _
  $region3: #{forward.1} parent=0 // loop_header
    %s13 = sphi 0, %s17
    %p14 = scmp.ge.s32.totalorder %s13, 4
    %s23 = sphi 0, %s25
    %s26 = sphi 0, %s23
    %s27 = sphi 0, %s26
    %s43 = sphi 0, %s27
    %s47 = sphi 0, %s47
    %s49 = sphi 0, %s47
    %s50 = sphi 0, %s49
    %s64 = sphi 0, %s50
    %s68 = sphi 0, %s68
    %s70 = sphi 0, %s68
    %s71 = sphi 0, %s70
    %s85 = sphi 0, %s71
    %s89 = sphi 0, %s89
    %s91 = sphi 0, %s89
    %s92 = sphi 0, %s91
    %s106 = sphi 0, %s92
    %s110 = sphi 0, %s110
    %s112 = sphi 0, %s110
    %s113 = sphi 0, %s112
    %s127 = sphi 0, %s113
    %s131 = sphi 0, %s131
    %s133 = sphi 0, %s131
    %s134 = sphi 0, %s133
    %s148 = sphi 0, %s134
    %s152 = sphi 0, %s152
    %s154 = sphi 0, %s152
    %s155 = sphi 0, %s154
    %s169 = sphi 0, %s155
    %s175 = sphi 0, %s177
    %s178 = sphi 0, %s175
    %s179 = sphi 0, %s178
    %s195 = sphi 0, %s179
  $region4: #{forward.1} parent=0 // loop_header_branch
    %16 = sbr.rel (%p14) target = $region8
  $region5: #{forward.1} parent=0 // loop_body
    %s18 = ssub.s32 %s13, 1
    %s19 = ssub.s32 %s13, 2
    %s20 = sadd.s32 %s13, 1
    %s21 = ssub.s32 %s13, %s20
    %p22 = scmp.eq.s32.totalorder %s21, 0
    %s24 = sadd.s32 %s23, 1
    %s25 = scalar_select %p22, %s23, %s24
    %p28 = pneg %p22
    %p29 = scmp.eq.s32.totalorder %s13, 1
    %p30 = por %p28, %p29
    %p31 = scmp.ne.s32.totalorder %s23, %s26
    %p32 = scmp.eq.s32.totalorder %s13, 0
    %p33 = por %p31, %p32
    %p34 = scmp.ne.s32.totalorder %s23, %s26
    %p35 = scmp.eq.s32.totalorder %s18, 1
    %p36 = por %p34, %p35
    %p37 = scmp.ne.s32.totalorder %s26, %s27
    %p38 = scmp.eq.s32.totalorder %s18, 0
    %p39 = por %p37, %p38
    %p40 = scmp.ne.s32.totalorder %s26, %s27
    %p41 = scmp.eq.s32.totalorder %s19, 1
    %p42 = por %p40, %p41
    %p44 = scmp.ne.s32.totalorder %s27, %s43
    %p45 = scmp.eq.s32.totalorder %s19, 0
    %p46 = por %p44, %p45
    %s48 = sadd.s32 %s47, 1
    %p51 = scmp.eq.s32.totalorder %s13, 1
    %p52 = scmp.ne.s32.totalorder %s47, %s49
    %p53 = scmp.eq.s32.totalorder %s13, 0
    %p54 = por %p52, %p53
    %p55 = scmp.ne.s32.totalorder %s47, %s49
    %p56 = scmp.eq.s32.totalorder %s18, 1
    %p57 = por %p55, %p56
    %p58 = scmp.ne.s32.totalorder %s49, %s50
    %p59 = scmp.eq.s32.totalorder %s18, 0
    %p60 = por %p58, %p59
    %p61 = scmp.ne.s32.totalorder %s49, %s50
    %p62 = scmp.eq.s32.totalorder %s19, 1
    %p63 = por %p61, %p62
    %p65 = scmp.ne.s32.totalorder %s50, %s64
    %p66 = scmp.eq.s32.totalorder %s19, 0
    %p67 = por %p65, %p66
    %s69 = sadd.s32 %s68, 1
    %p72 = scmp.eq.s32.totalorder %s13, 1
    %p73 = scmp.ne.s32.totalorder %s68, %s70
    %p74 = scmp.eq.s32.totalorder %s13, 0
    %p75 = por %p73, %p74
    %p76 = scmp.ne.s32.totalorder %s68, %s70
    %p77 = scmp.eq.s32.totalorder %s18, 1
    %p78 = por %p76, %p77
    %p79 = scmp.ne.s32.totalorder %s70, %s71
    %p80 = scmp.eq.s32.totalorder %s18, 0
    %p81 = por %p79, %p80
    %p82 = scmp.ne.s32.totalorder %s70, %s71
    %p83 = scmp.eq.s32.totalorder %s19, 1
    %p84 = por %p82, %p83
    %p86 = scmp.ne.s32.totalorder %s71, %s85
    %p87 = scmp.eq.s32.totalorder %s19, 0
    %p88 = por %p86, %p87
    %s90 = sadd.s32 %s89, 1
    %p93 = scmp.eq.s32.totalorder %s13, 1
    %p94 = scmp.ne.s32.totalorder %s89, %s91
    %p95 = scmp.eq.s32.totalorder %s13, 0
    %p96 = por %p94, %p95
    %p97 = scmp.ne.s32.totalorder %s89, %s91
    %p98 = scmp.eq.s32.totalorder %s18, 1
    %p99 = por %p97, %p98
    %p100 = scmp.ne.s32.totalorder %s91, %s92
    %p101 = scmp.eq.s32.totalorder %s18, 0
    %p102 = por %p100, %p101
    %p103 = scmp.ne.s32.totalorder %s91, %s92
    %p104 = scmp.eq.s32.totalorder %s19, 1
    %p105 = por %p103, %p104
    %p107 = scmp.ne.s32.totalorder %s92, %s106
    %p108 = scmp.eq.s32.totalorder %s19, 0
    %p109 = por %p107, %p108
    %s111 = sadd.s32 %s110, 1
    %p114 = scmp.eq.s32.totalorder %s13, 1
    %p115 = scmp.ne.s32.totalorder %s110, %s112
    %p116 = scmp.eq.s32.totalorder %s13, 0
    %p117 = por %p115, %p116
    %p118 = scmp.ne.s32.totalorder %s110, %s112
    %p119 = scmp.eq.s32.totalorder %s18, 1
    %p120 = por %p118, %p119
    %p121 = scmp.ne.s32.totalorder %s112, %s113
    %p122 = scmp.eq.s32.totalorder %s18, 0
    %p123 = por %p121, %p122
    %p124 = scmp.ne.s32.totalorder %s112, %s113
    %p125 = scmp.eq.s32.totalorder %s19, 1
    %p126 = por %p124, %p125
    %p128 = scmp.ne.s32.totalorder %s113, %s127
    %p129 = scmp.eq.s32.totalorder %s19, 0
    %p130 = por %p128, %p129
    %s132 = sadd.s32 %s131, 1
    %p135 = scmp.eq.s32.totalorder %s13, 1
    %p136 = scmp.ne.s32.totalorder %s131, %s133
    %p137 = scmp.eq.s32.totalorder %s13, 0
    %p138 = por %p136, %p137
    %p139 = scmp.ne.s32.totalorder %s131, %s133
    %p140 = scmp.eq.s32.totalorder %s18, 1
    %p141 = por %p139, %p140
    %p142 = scmp.ne.s32.totalorder %s133, %s134
    %p143 = scmp.eq.s32.totalorder %s18, 0
    %p144 = por %p142, %p143
    %p145 = scmp.ne.s32.totalorder %s133, %s134
    %p146 = scmp.eq.s32.totalorder %s19, 1
    %p147 = por %p145, %p146
    %p149 = scmp.ne.s32.totalorder %s134, %s148
    %p150 = scmp.eq.s32.totalorder %s19, 0
    %p151 = por %p149, %p150
    %s153 = sadd.s32 %s152, 1
    %p156 = scmp.eq.s32.totalorder %s13, 1
    %p157 = scmp.ne.s32.totalorder %s152, %s154
    %p158 = scmp.eq.s32.totalorder %s13, 0
    %p159 = por %p157, %p158
    %p160 = scmp.ne.s32.totalorder %s152, %s154
    %p161 = scmp.eq.s32.totalorder %s18, 1
    %p162 = por %p160, %p161
    %p163 = scmp.ne.s32.totalorder %s154, %s155
    %p164 = scmp.eq.s32.totalorder %s18, 0
    %p165 = por %p163, %p164
    %p166 = scmp.ne.s32.totalorder %s154, %s155
    %p167 = scmp.eq.s32.totalorder %s19, 1
    %p168 = por %p166, %p167
    %p170 = scmp.ne.s32.totalorder %s155, %s169
    %p171 = scmp.eq.s32.totalorder %s19, 0
    %p172 = por %p170, %p171
    %s173 = ssub.s32 %s13, %s20
    %p174 = scmp.eq.s32.totalorder %s173, 0
    %s176 = sadd.s32 %s175, 1
    %s177 = scalar_select %p174, %s175, %s176
    %p180 = pneg %p174
    %p181 = scmp.eq.s32.totalorder %s13, 1
    %p182 = por %p180, %p181
    %p183 = scmp.ne.s32.totalorder %s175, %s178
    %p184 = scmp.eq.s32.totalorder %s13, 0
    %p185 = por %p183, %p184
    %p186 = scmp.ne.s32.totalorder %s175, %s178
    %p187 = scmp.eq.s32.totalorder %s18, 1
    %p188 = por %p186, %p187
    %p189 = scmp.ne.s32.totalorder %s178, %s179
    %p190 = scmp.eq.s32.totalorder %s18, 0
    %p191 = por %p189, %p190
    %p192 = scmp.ne.s32.totalorder %s178, %s179
    %p193 = scmp.eq.s32.totalorder %s19, 1
    %p194 = por %p192, %p193
    %p196 = scmp.ne.s32.totalorder %s179, %s195
    %p197 = scmp.eq.s32.totalorder %s19, 0
    %p198 = por %p196, %p197
    %p199 = scmp.le.s32.totalorder 1, %s13
    %p200 = scmp.lt.s32.totalorder %s13, 3
    %p201 = pnand %p199, %p200
    %p202 = pneg %p201
    // Predicated region
    $region9: #{forward.1} parent=5 // pred_check
      _
    $region10: #{forward.1} parent=5 // pred_check_branch
      %204 = sbr.rel (%p201) target = $region12
    $region11: #{forward.1} parent=5 // pred_region
      %s205 = ssub.s32 %s13, 1
      // Predicated region
      $region13: #{forward.1} parent=11 // pred_check
        %p206 = pneg %p60
      $region14: #{forward.1} parent=11 // pred_check_branch
        %208 = sbr.rel (%p206) target = $region16
      $region15: #{forward.1} parent=11 // pred_region
        _
      $region16: #{forward.1} parent=11 // pred_fallthru
        _
      // Predicated region
      $region17: #{forward.1} parent=11 // pred_check
        %p209 = pneg %p81
      $region18: #{forward.1} parent=11 // pred_check_branch
        %211 = sbr.rel (%p209) target = $region20
      $region19: #{forward.1} parent=11 // pred_region
        _
      $region20: #{forward.1} parent=11 // pred_fallthru
        _
      // Predicated region
      $region21: #{forward.1} parent=11 // pred_check
        %p212 = pneg %p102
      $region22: #{forward.1} parent=11 // pred_check_branch
        %214 = sbr.rel (%p212) target = $region24
      $region23: #{forward.1} parent=11 // pred_region
        _
      $region24: #{forward.1} parent=11 // pred_fallthru
        _
      // Predicated region
      $region25: #{forward.1} parent=11 // pred_check
        %p215 = pneg %p123
      $region26: #{forward.1} parent=11 // pred_check_branch
        %217 = sbr.rel (%p215) target = $region28
      $region27: #{forward.1} parent=11 // pred_region
        _
      $region28: #{forward.1} parent=11 // pred_fallthru
        _
      // Predicated region
      $region29: #{forward.1} parent=11 // pred_check
        %p218 = pneg %p144
      $region30: #{forward.1} parent=11 // pred_check_branch
        %220 = sbr.rel (%p218) target = $region32
      $region31: #{forward.1} parent=11 // pred_region
        _
      $region32: #{forward.1} parent=11 // pred_fallthru
        _
      // Predicated region
      $region33: #{forward.1} parent=11 // pred_check
        %p221 = pneg %p165
      $region34: #{forward.1} parent=11 // pred_check_branch
        %223 = sbr.rel (%p221) target = $region36
      $region35: #{forward.1} parent=11 // pred_region
        _
      $region36: #{forward.1} parent=11 // pred_fallthru
        _
    $region12: #{forward.1} parent=5 // pred_fallthru
      _
    %p224 = scmp.lt.s32.totalorder %s13, 2
    // Predicated region
    $region37: #{forward.1} parent=5 // pred_check
      %p225 = pneg %p224
    $region38: #{forward.1} parent=5 // pred_check_branch
      %227 = sbr.rel (%p225) target = $region40
    $region39: #{forward.1} parent=5 // pred_region
      // Predicated region
      $region41: #{forward.1} parent=39 // pred_check
        %p228 = pneg %p33
      $region42: #{forward.1} parent=39 // pred_check_branch
        %230 = sbr.rel (%p228) target = $region44
      $region43: #{forward.1} parent=39 // pred_region
        %s231 = smul.u32 16, %s13
        %p232 = scmp.lt.s32.totalorder %s231, 31
        %s233 = scalar_select %p232, %s231, 31
        %s234 = smul.addr %s233, 8
        %s235 = scalar_lea.vmem %s0, %s234
        %s236 = smul.u32 16, %s13
      $region44: #{forward.1} parent=39 // pred_fallthru
        _
    $region40: #{forward.1} parent=5 // pred_fallthru
      _
    %p237 = scmp.le.s32.totalorder 1, %s13
    %p238 = scmp.lt.s32.totalorder %s13, 3
    %p239 = pnand %p237, %p238
    %p240 = pneg %p239
    // Predicated region
    $region45: #{forward.1} parent=5 // pred_check
      _
    $region46: #{forward.1} parent=5 // pred_check_branch
      %242 = sbr.rel (%p239) target = $region48
    $region47: #{forward.1} parent=5 // pred_region
      %s243 = ssub.s32 %s13, 1
      %s244 = smul.u32 16, %s18
      %p245 = scmp.lt.s32.totalorder %s244, 31
      %s246 = scalar_select %p245, %s244, 31
      %s247 = smul.addr %s246, 8
      %s248 = scalar_lea.vmem %s0, %s247
      %p249 = pneg %p39
      %p250 = pneg %p36
      %p251 = pneg %p60
      %p252 = pneg %p57
      %p253 = pneg %p81
      %p254 = pneg %p78
      %p255 = pneg %p102
      %p256 = pneg %p99
      %p257 = pneg %p123
      %p258 = pneg %p120
      %p259 = pneg %p144
      %p260 = pneg %p141
      %p261 = pneg %p165
      %p262 = pneg %p162
      %p263 = pneg %p191
      %p264 = pneg %p188
      %s265 = smul.u32 4, %s18
      %p266 = scmp.lt.s32.totalorder %s265, 7
      %s267 = scalar_select %p266, %s265, 7
      %s268 = smul.addr %s267, 8
      %s269 = scalar_lea.vmem %s7, %s268
      %s270 = smul.u32 16, %s18
      %p271 = scmp.lt.s32.totalorder %s270, 31
      %s272 = scalar_select %p271, %s270, 31
      %s273 = smul.addr %s272, 8
      %s274 = scalar_lea.vmem %s0, %s273
      %s275 = smul.u32 16, %s18
      %s276 = smul.u32 4, %s18
      %p277 = scmp.lt.s32.totalorder %s276, 7
      %s278 = scalar_select %p277, %s276, 7
      %s279 = smul.addr %s278, 8
      %s280 = scalar_lea.vmem %s7, %s279
      %s281 = smul.u32 4, %s18
      %v282 = vld [vmem:[%s274] sm:$0xff]
      %v283 = vld [vmem:[%s274 + $0x8] sm:$0xff]
      %v284 = vld [vmem:[%s274 + $0x10] sm:$0xff]
      %v285 = vld [vmem:[%s274 + $0x18] sm:$0xff]
      %v286 = vld [vmem:[%s274 + $0x20] sm:$0xff]
      %v287 = vld [vmem:[%s274 + $0x28] sm:$0xff]
      %v288 = vld [vmem:[%s274 + $0x30] sm:$0xff]
      %v289 = vld [vmem:[%s274 + $0x38] sm:$0xff]
      %v290 = vld [vmem:[%s274 + $0x40] sm:$0xff]
      %v291 = vld [vmem:[%s274 + $0x48] sm:$0xff]
      %v292 = vld [vmem:[%s274 + $0x50] sm:$0xff]
      %v293 = vld [vmem:[%s274 + $0x58] sm:$0xff]
      %v294 = vld [vmem:[%s274 + $0x60] sm:$0xff]
      %v295 = vld [vmem:[%s274 + $0x68] sm:$0xff]
      %v296 = vld [vmem:[%s274 + $0x70] sm:$0xff]
      %v297 = vld [vmem:[%s274 + $0x78] sm:$0xff]
      %v298 = vlaneseq
      %v299 = vshrl.u32 %v298, 7
      %v300 = vadd.s32 %v299, 8
      %v301 = vadd.s32 %v299, 16
      %v302 = vadd.s32 %v299, 24
      %v303 = vadd.s32 %v299, 32
      %v304 = vadd.s32 %v299, 40
      %v305 = vadd.s32 %v299, 48
      %v306 = vadd.s32 %v299, 56
      %v307 = vadd.s32 %v299, 64
      %v308 = vadd.s32 %v299, 72
      %v309 = vadd.s32 %v299, 80
      %v310 = vadd.s32 %v299, 88
      %v311 = vadd.s32 %v299, 96
      %v312 = vadd.s32 %v299, 104
      %v313 = vadd.s32 %v299, 112
      %v314 = vadd.s32 %v299, 120
      %v315 = vand.u32 %v299, 15
      %v316 = vand.u32 %v300, 15
      %v317 = vand.u32 %v301, 15
      %v318 = vand.u32 %v302, 15
      %v319 = vand.u32 %v303, 15
      %v320 = vand.u32 %v304, 15
      %v321 = vand.u32 %v305, 15
      %v322 = vand.u32 %v306, 15
      %v323 = vand.u32 %v307, 15
      %v324 = vand.u32 %v308, 15
      %v325 = vand.u32 %v309, 15
      %v326 = vand.u32 %v310, 15
      %v327 = vand.u32 %v311, 15
      %v328 = vand.u32 %v312, 15
      %v329 = vand.u32 %v313, 15
      %v330 = vand.u32 %v314, 15
      %vm331 = vcmp.eq.s32.totalorder %v315, 0
      %vm332 = vcmp.eq.s32.totalorder %v316, 0
      %vm333 = vcmp.eq.s32.totalorder %v317, 0
      %vm334 = vcmp.eq.s32.totalorder %v318, 0
      %vm335 = vcmp.eq.s32.totalorder %v319, 0
      %vm336 = vcmp.eq.s32.totalorder %v320, 0
      %vm337 = vcmp.eq.s32.totalorder %v321, 0
      %vm338 = vcmp.eq.s32.totalorder %v322, 0
      %vm339 = vcmp.eq.s32.totalorder %v323, 0
      %vm340 = vcmp.eq.s32.totalorder %v324, 0
      %vm341 = vcmp.eq.s32.totalorder %v325, 0
      %vm342 = vcmp.eq.s32.totalorder %v326, 0
      %vm343 = vcmp.eq.s32.totalorder %v327, 0
      %vm344 = vcmp.eq.s32.totalorder %v328, 0
      %vm345 = vcmp.eq.s32.totalorder %v329, 0
      %vm346 = vcmp.eq.s32.totalorder %v330, 0
      %vm347 = vcmp.eq.s32.totalorder %v315, 15
      %vm348 = vcmp.eq.s32.totalorder %v316, 15
      %vm349 = vcmp.eq.s32.totalorder %v317, 15
      %vm350 = vcmp.eq.s32.totalorder %v318, 15
      %vm351 = vcmp.eq.s32.totalorder %v319, 15
      %vm352 = vcmp.eq.s32.totalorder %v320, 15
      %vm353 = vcmp.eq.s32.totalorder %v321, 15
      %vm354 = vcmp.eq.s32.totalorder %v322, 15
      %vm355 = vcmp.eq.s32.totalorder %v323, 15
      %vm356 = vcmp.eq.s32.totalorder %v324, 15
      %vm357 = vcmp.eq.s32.totalorder %v325, 15
      %vm358 = vcmp.eq.s32.totalorder %v326, 15
      %vm359 = vcmp.eq.s32.totalorder %v327, 15
      %vm360 = vcmp.eq.s32.totalorder %v328, 15
      %vm361 = vcmp.eq.s32.totalorder %v329, 15
      %vm362 = vcmp.eq.s32.totalorder %v330, 15
      %v363 = vld [vmem:[%s1] sm:$0xff]
      %v364 = vld [vmem:[%s1 + $0x8] sm:$0xff]
      %v365 = vld [vmem:[%s1 + $0x10] sm:$0xff]
      %v366 = vld [vmem:[%s1 + $0x18] sm:$0xff]
      %v367 = vld [vmem:[%s1 + $0x20] sm:$0xff]
      %v368 = vld [vmem:[%s1 + $0x28] sm:$0xff]
      %v369 = vld [vmem:[%s1 + $0x30] sm:$0xff]
      %v370 = vld [vmem:[%s1 + $0x38] sm:$0xff]
      %v371 = vld [vmem:[%s1 + $0x40] sm:$0xff]
      %v372 = vld [vmem:[%s1 + $0x48] sm:$0xff]
      %v373 = vld [vmem:[%s1 + $0x50] sm:$0xff]
      %v374 = vld [vmem:[%s1 + $0x58] sm:$0xff]
      %v375 = vld [vmem:[%s1 + $0x60] sm:$0xff]
      %v376 = vld [vmem:[%s1 + $0x68] sm:$0xff]
      %v377 = vld [vmem:[%s1 + $0x70] sm:$0xff]
      %v378 = vld [vmem:[%s1 + $0x78] sm:$0xff]
      %v379 = vld [vmem:[%s1 + $0x80] sm:$0xff]
      %v380 = vld [vmem:[%s1 + $0x88] sm:$0xff]
      %v381 = vld [vmem:[%s1 + $0x90] sm:$0xff]
      %v382 = vld [vmem:[%s1 + $0x98] sm:$0xff]
      %v383 = vld [vmem:[%s1 + $0xa0] sm:$0xff]
      %v384 = vld [vmem:[%s1 + $0xa8] sm:$0xff]
      %v385 = vld [vmem:[%s1 + $0xb0] sm:$0xff]
      %v386 = vld [vmem:[%s1 + $0xb8] sm:$0xff]
      %v387 = vld [vmem:[%s1 + $0xc0] sm:$0xff]
      %v388 = vld [vmem:[%s1 + $0xc8] sm:$0xff]
      %v389 = vld [vmem:[%s1 + $0xd0] sm:$0xff]
      %v390 = vld [vmem:[%s1 + $0xd8] sm:$0xff]
      %v391 = vld [vmem:[%s1 + $0xe0] sm:$0xff]
      %v392 = vld [vmem:[%s1 + $0xe8] sm:$0xff]
      %v393 = vld [vmem:[%s1 + $0xf0] sm:$0xff]
      %v394 = vld [vmem:[%s1 + $0xf8] sm:$0xff]
      %v395 = vld [vmem:[%s1 + $0x100] sm:$0xff]
      %v396 = vld [vmem:[%s1 + $0x108] sm:$0xff]
      %v397 = vld [vmem:[%s1 + $0x110] sm:$0xff]
      %v398 = vld [vmem:[%s1 + $0x118] sm:$0xff]
      %v399 = vld [vmem:[%s1 + $0x120] sm:$0xff]
      %v400 = vld [vmem:[%s1 + $0x128] sm:$0xff]
      %v401 = vld [vmem:[%s1 + $0x130] sm:$0xff]
      %v402 = vld [vmem:[%s1 + $0x138] sm:$0xff]
      %v403 = vld [vmem:[%s1 + $0x140] sm:$0xff]
      %v404 = vld [vmem:[%s1 + $0x148] sm:$0xff]
      %v405 = vld [vmem:[%s1 + $0x150] sm:$0xff]
      %v406 = vld [vmem:[%s1 + $0x158] sm:$0xff]
      %v407 = vld [vmem:[%s1 + $0x160] sm:$0xff]
      %v408 = vld [vmem:[%s1 + $0x168] sm:$0xff]
      %v409 = vld [vmem:[%s1 + $0x170] sm:$0xff]
      %v410 = vld [vmem:[%s1 + $0x178] sm:$0xff]
      %v411 = vrot.slane %v282, 7
      %v412 = vrot.slane %v283, 7
      %v413 = vrot.slane %v284, 7
      %v414 = vrot.slane %v285, 7
      %v415 = vrot.slane %v286, 7
      %v416 = vrot.slane %v287, 7
      %v417 = vrot.slane %v288, 7
      %v418 = vrot.slane %v289, 7
      %v419 = vrot.slane %v290, 7
      %v420 = vrot.slane %v291, 7
      %v421 = vrot.slane %v292, 7
      %v422 = vrot.slane %v293, 7
      %v423 = vrot.slane %v294, 7
      %v424 = vrot.slane %v295, 7
      %v425 = vrot.slane %v296, 7
      %v426 = vrot.slane %v297, 7
      %vm427 = vcmp.lt.s32.totalorder %v299, 1
      %v428 = vsel %vm427, %v425, %v426
      %v429 = vsel %vm427, %v424, %v425
      %v430 = vsel %vm427, %v423, %v424
      %v431 = vsel %vm427, %v422, %v423
      %v432 = vsel %vm427, %v421, %v422
      %v433 = vsel %vm427, %v420, %v421
      %v434 = vsel %vm427, %v419, %v420
      %v435 = vsel %vm427, %v418, %v419
      %v436 = vsel %vm427, %v417, %v418
      %v437 = vsel %vm427, %v416, %v417
      %v438 = vsel %vm427, %v415, %v416
      %v439 = vsel %vm427, %v414, %v415
      %v440 = vsel %vm427, %v413, %v414
      %v441 = vsel %vm427, %v412, %v413
      %v442 = vsel %vm427, %v411, %v412
      %v443 = vsel %vm427, %v426, %v411
      %v444 = vsel %vm331, 1, 0
      %v445 = vsel %vm332, 1, 0
      %v446 = vsel %vm333, 1, 0
      %v447 = vsel %vm334, 1, 0
      %v448 = vsel %vm335, 1, 0
      %v449 = vsel %vm336, 1, 0
      %v450 = vsel %vm337, 1, 0
      %v451 = vsel %vm338, 1, 0
      %v452 = vsel %vm339, 1, 0
      %v453 = vsel %vm340, 1, 0
      %v454 = vsel %vm341, 1, 0
      %v455 = vsel %vm342, 1, 0
      %v456 = vsel %vm343, 1, 0
      %v457 = vsel %vm344, 1, 0
      %v458 = vsel %vm345, 1, 0
      %v459 = vsel %vm346, 1, 0
      %vm460 = vcmp.eq.s32.totalorder %v444, 1
      %vm461 = vcmp.eq.s32.totalorder %v445, 1
      %vm462 = vcmp.eq.s32.totalorder %v446, 1
      %vm463 = vcmp.eq.s32.totalorder %v447, 1
      %vm464 = vcmp.eq.s32.totalorder %v448, 1
      %vm465 = vcmp.eq.s32.totalorder %v449, 1
      %vm466 = vcmp.eq.s32.totalorder %v450, 1
      %vm467 = vcmp.eq.s32.totalorder %v451, 1
      %vm468 = vcmp.eq.s32.totalorder %v452, 1
      %vm469 = vcmp.eq.s32.totalorder %v453, 1
      %vm470 = vcmp.eq.s32.totalorder %v454, 1
      %vm471 = vcmp.eq.s32.totalorder %v455, 1
      %vm472 = vcmp.eq.s32.totalorder %v456, 1
      %vm473 = vcmp.eq.s32.totalorder %v457, 1
      %vm474 = vcmp.eq.s32.totalorder %v458, 1
      %vm475 = vcmp.eq.s32.totalorder %v459, 1
      %v476 = vsel %vm460, %v282, %v443
      %v477 = vsel %vm461, %v283, %v442
      %v478 = vsel %vm462, %v284, %v441
      %v479 = vsel %vm463, %v285, %v440
      %v480 = vsel %vm464, %v286, %v439
      %v481 = vsel %vm465, %v287, %v438
      %v482 = vsel %vm466, %v288, %v437
      %v483 = vsel %vm467, %v289, %v436
      %v484 = vsel %vm468, %v290, %v435
      %v485 = vsel %vm469, %v291, %v434
      %v486 = vsel %vm470, %v292, %v433
      %v487 = vsel %vm471, %v293, %v432
      %v488 = vsel %vm472, %v294, %v431
      %v489 = vsel %vm473, %v295, %v430
      %v490 = vsel %vm474, %v296, %v429
      %v491 = vsel %vm475, %v297, %v428
      %v492 = vrot.slane %v282, 1
      %v493 = vrot.slane %v283, 1
      %v494 = vrot.slane %v284, 1
      %v495 = vrot.slane %v285, 1
      %v496 = vrot.slane %v286, 1
      %v497 = vrot.slane %v287, 1
      %v498 = vrot.slane %v288, 1
      %v499 = vrot.slane %v289, 1
      %v500 = vrot.slane %v290, 1
      %v501 = vrot.slane %v291, 1
      %v502 = vrot.slane %v292, 1
      %v503 = vrot.slane %v293, 1
      %v504 = vrot.slane %v294, 1
      %v505 = vrot.slane %v295, 1
      %v506 = vrot.slane %v296, 1
      %v507 = vrot.slane %v297, 1
      %vm508 = vcmp.lt.s32.totalorder %v299, 7
      %v509 = vsel %vm508, %v506, %v507
      %v510 = vsel %vm508, %v505, %v506
      %v511 = vsel %vm508, %v504, %v505
      %v512 = vsel %vm508, %v503, %v504
      %v513 = vsel %vm508, %v502, %v503
      %v514 = vsel %vm508, %v501, %v502
      %v515 = vsel %vm508, %v500, %v501
      %v516 = vsel %vm508, %v499, %v500
      %v517 = vsel %vm508, %v498, %v499
      %v518 = vsel %vm508, %v497, %v498
      %v519 = vsel %vm508, %v496, %v497
      %v520 = vsel %vm508, %v495, %v496
      %v521 = vsel %vm508, %v494, %v495
      %v522 = vsel %vm508, %v493, %v494
      %v523 = vsel %vm508, %v492, %v493
      %v524 = vsel %vm508, %v507, %v492
      %v525 = vsel %vm347, 1, 0
      %v526 = vsel %vm348, 1, 0
      %v527 = vsel %vm349, 1, 0
      %v528 = vsel %vm350, 1, 0
      %v529 = vsel %vm351, 1, 0
      %v530 = vsel %vm352, 1, 0
      %v531 = vsel %vm353, 1, 0
      %v532 = vsel %vm354, 1, 0
      %v533 = vsel %vm355, 1, 0
      %v534 = vsel %vm356, 1, 0
      %v535 = vsel %vm357, 1, 0
      %v536 = vsel %vm358, 1, 0
      %v537 = vsel %vm359, 1, 0
      %v538 = vsel %vm360, 1, 0
      %v539 = vsel %vm361, 1, 0
      %v540 = vsel %vm362, 1, 0
      %vm541 = vcmp.eq.s32.totalorder %v525, 1
      %vm542 = vcmp.eq.s32.totalorder %v526, 1
      %vm543 = vcmp.eq.s32.totalorder %v527, 1
      %vm544 = vcmp.eq.s32.totalorder %v528, 1
      %vm545 = vcmp.eq.s32.totalorder %v529, 1
      %vm546 = vcmp.eq.s32.totalorder %v530, 1
      %vm547 = vcmp.eq.s32.totalorder %v531, 1
      %vm548 = vcmp.eq.s32.totalorder %v532, 1
      %vm549 = vcmp.eq.s32.totalorder %v533, 1
      %vm550 = vcmp.eq.s32.totalorder %v534, 1
      %vm551 = vcmp.eq.s32.totalorder %v535, 1
      %vm552 = vcmp.eq.s32.totalorder %v536, 1
      %vm553 = vcmp.eq.s32.totalorder %v537, 1
      %vm554 = vcmp.eq.s32.totalorder %v538, 1
      %vm555 = vcmp.eq.s32.totalorder %v539, 1
      %vm556 = vcmp.eq.s32.totalorder %v540, 1
      %v557 = vsel %vm541, %v282, %v523
      %v558 = vsel %vm542, %v283, %v522
      %v559 = vsel %vm543, %v284, %v521
      %v560 = vsel %vm544, %v285, %v520
      %v561 = vsel %vm545, %v286, %v519
      %v562 = vsel %vm546, %v287, %v518
      %v563 = vsel %vm547, %v288, %v517
      %v564 = vsel %vm548, %v289, %v516
      %v565 = vsel %vm549, %v290, %v515
      %v566 = vsel %vm550, %v291, %v514
      %v567 = vsel %vm551, %v292, %v513
      %v568 = vsel %vm552, %v293, %v512
      %v569 = vsel %vm553, %v294, %v511
      %v570 = vsel %vm554, %v295, %v510
      %v571 = vsel %vm555, %v296, %v509
      %v572 = vsel %vm556, %v297, %v524
      %573 = vmatpush.msra.mxu0 %v378
      %574 = vmatpush.msra.mxu0 %v377
      %575 = vmatpush.msra.mxu0 %v376
      %576 = vmatpush.msra.mxu0 %v375
      %577 = vmatpush.msra.mxu0 %v374
      %578 = vmatpush.msra.mxu0 %v373
      %579 = vmatpush.msra.mxu0 %v372
      %580 = vmatpush.msra.mxu0 %v371
      %581 = vmatpush.msra.mxu0 %v370
      %582 = vmatpush.msra.mxu0 %v369
      %583 = vmatpush.msra.mxu0 %v368
      %584 = vmatpush.msra.mxu0 %v367
      %585 = vmatpush.msra.mxu0 %v366
      %586 = vmatpush.msra.mxu0 %v365
      %587 = vmatpush.msra.mxu0 %v364
      %588 = vmatpush.msra.mxu0 %v363
      %589 = vmatmul.f32.gmra.mxu0 %v476
      %v590 = vpop.f32.mrf.mxu0
      %v591 = vadd.f32 0.0, %v590
      %592 = vmatmul.f32.gmra.mxu0 %v477
      %v593 = vpop.f32.mrf.mxu0
      %v594 = vadd.f32 0.0, %v593
      %595 = vmatmul.f32.gmra.mxu0 %v478
      %v596 = vpop.f32.mrf.mxu0
      %v597 = vadd.f32 0.0, %v596
      %598 = vmatmul.f32.gmra.mxu0 %v479
      %v599 = vpop.f32.mrf.mxu0
      %v600 = vadd.f32 0.0, %v599
      %601 = vmatmul.f32.gmra.mxu0 %v480
      %v602 = vpop.f32.mrf.mxu0
      %v603 = vadd.f32 0.0, %v602
      %604 = vmatmul.f32.gmra.mxu0 %v481
      %v605 = vpop.f32.mrf.mxu0
      %v606 = vadd.f32 0.0, %v605
      %607 = vmatmul.f32.gmra.mxu0 %v482
      %v608 = vpop.f32.mrf.mxu0
      %v609 = vadd.f32 0.0, %v608
      %610 = vmatmul.f32.gmra.mxu0 %v483
      %v611 = vpop.f32.mrf.mxu0
      %v612 = vadd.f32 0.0, %v611
      %613 = vmatmul.f32.gmra.mxu0 %v484
      %v614 = vpop.f32.mrf.mxu0
      %v615 = vadd.f32 0.0, %v614
      %616 = vmatmul.f32.gmra.mxu0 %v485
      %v617 = vpop.f32.mrf.mxu0
      %v618 = vadd.f32 0.0, %v617
      %619 = vmatmul.f32.gmra.mxu0 %v486
      %v620 = vpop.f32.mrf.mxu0
      %v621 = vadd.f32 0.0, %v620
      %622 = vmatmul.f32.gmra.mxu0 %v487
      %v623 = vpop.f32.mrf.mxu0
      %v624 = vadd.f32 0.0, %v623
      %625 = vmatmul.f32.gmra.mxu0 %v488
      %v626 = vpop.f32.mrf.mxu0
      %v627 = vadd.f32 0.0, %v626
      %628 = vmatmul.f32.gmra.mxu0 %v489
      %v629 = vpop.f32.mrf.mxu0
      %v630 = vadd.f32 0.0, %v629
      %631 = vmatmul.f32.gmra.mxu0 %v490
      %v632 = vpop.f32.mrf.mxu0
      %v633 = vadd.f32 0.0, %v632
      %634 = vmatmul.f32.gmra.mxu0 %v491
      %v635 = vpop.f32.mrf.mxu0
      %v636 = vadd.f32 0.0, %v635
      %637 = vdwg.mxu0
      %638 = vmatpush.msra.mxu0 %v394
      %639 = vmatpush.msra.mxu0 %v393
      %640 = vmatpush.msra.mxu0 %v392
      %641 = vmatpush.msra.mxu0 %v391
      %642 = vmatpush.msra.mxu0 %v390
      %643 = vmatpush.msra.mxu0 %v389
      %644 = vmatpush.msra.mxu0 %v388
      %645 = vmatpush.msra.mxu0 %v387
      %646 = vmatpush.msra.mxu0 %v386
      %647 = vmatpush.msra.mxu0 %v385
      %648 = vmatpush.msra.mxu0 %v384
      %649 = vmatpush.msra.mxu0 %v383
      %650 = vmatpush.msra.mxu0 %v382
      %651 = vmatpush.msra.mxu0 %v381
      %652 = vmatpush.msra.mxu0 %v380
      %653 = vmatpush.msra.mxu0 %v379
      %654 = vmatmul.f32.gmra.mxu0 %v282
      %v655 = vpop.f32.mrf.mxu0
      %v656 = vadd.f32 %v591, %v655
      %657 = vmatmul.f32.gmra.mxu0 %v283
      %v658 = vpop.f32.mrf.mxu0
      %v659 = vadd.f32 %v594, %v658
      %660 = vmatmul.f32.gmra.mxu0 %v284
      %v661 = vpop.f32.mrf.mxu0
      %v662 = vadd.f32 %v597, %v661
      %663 = vmatmul.f32.gmra.mxu0 %v285
      %v664 = vpop.f32.mrf.mxu0
      %v665 = vadd.f32 %v600, %v664
      %666 = vmatmul.f32.gmra.mxu0 %v286
      %v667 = vpop.f32.mrf.mxu0
      %v668 = vadd.f32 %v603, %v667
      %669 = vmatmul.f32.gmra.mxu0 %v287
      %v670 = vpop.f32.mrf.mxu0
      %v671 = vadd.f32 %v606, %v670
      %672 = vmatmul.f32.gmra.mxu0 %v288
      %v673 = vpop.f32.mrf.mxu0
      %v674 = vadd.f32 %v609, %v673
      %675 = vmatmul.f32.gmra.mxu0 %v289
      %v676 = vpop.f32.mrf.mxu0
      %v677 = vadd.f32 %v612, %v676
      %678 = vmatmul.f32.gmra.mxu0 %v290
      %v679 = vpop.f32.mrf.mxu0
      %v680 = vadd.f32 %v615, %v679
      %681 = vmatmul.f32.gmra.mxu0 %v291
      %v682 = vpop.f32.mrf.mxu0
      %v683 = vadd.f32 %v618, %v682
      %684 = vmatmul.f32.gmra.mxu0 %v292
      %v685 = vpop.f32.mrf.mxu0
      %v686 = vadd.f32 %v621, %v685
      %687 = vmatmul.f32.gmra.mxu0 %v293
      %v688 = vpop.f32.mrf.mxu0
      %v689 = vadd.f32 %v624, %v688
      %690 = vmatmul.f32.gmra.mxu0 %v294
      %v691 = vpop.f32.mrf.mxu0
      %v692 = vadd.f32 %v627, %v691
      %693 = vmatmul.f32.gmra.mxu0 %v295
      %v694 = vpop.f32.mrf.mxu0
      %v695 = vadd.f32 %v630, %v694
      %696 = vmatmul.f32.gmra.mxu0 %v296
      %v697 = vpop.f32.mrf.mxu0
      %v698 = vadd.f32 %v633, %v697
      %699 = vmatmul.f32.gmra.mxu0 %v297
      %v700 = vpop.f32.mrf.mxu0
      %v701 = vadd.f32 %v636, %v700
      %702 = vdwg.mxu0
      %703 = vmatpush.msra.mxu0 %v410
      %704 = vmatpush.msra.mxu0 %v409
      %705 = vmatpush.msra.mxu0 %v408
      %706 = vmatpush.msra.mxu0 %v407
      %707 = vmatpush.msra.mxu0 %v406
      %708 = vmatpush.msra.mxu0 %v405
      %709 = vmatpush.msra.mxu0 %v404
      %710 = vmatpush.msra.mxu0 %v403
      %711 = vmatpush.msra.mxu0 %v402
      %712 = vmatpush.msra.mxu0 %v401
      %713 = vmatpush.msra.mxu0 %v400
      %714 = vmatpush.msra.mxu0 %v399
      %715 = vmatpush.msra.mxu0 %v398
      %716 = vmatpush.msra.mxu0 %v397
      %717 = vmatpush.msra.mxu0 %v396
      %718 = vmatpush.msra.mxu0 %v395
      %719 = vmatmul.f32.gmra.mxu0 %v557
      %v720 = vpop.f32.mrf.mxu0
      %v721 = vadd.f32 %v656, %v720
      %722 = vmatmul.f32.gmra.mxu0 %v558
      %v723 = vpop.f32.mrf.mxu0
      %v724 = vadd.f32 %v659, %v723
      %725 = vmatmul.f32.gmra.mxu0 %v559
      %v726 = vpop.f32.mrf.mxu0
      %v727 = vadd.f32 %v662, %v726
      %728 = vmatmul.f32.gmra.mxu0 %v560
      %v729 = vpop.f32.mrf.mxu0
      %v730 = vadd.f32 %v665, %v729
      %731 = vmatmul.f32.gmra.mxu0 %v561
      %v732 = vpop.f32.mrf.mxu0
      %v733 = vadd.f32 %v668, %v732
      %734 = vmatmul.f32.gmra.mxu0 %v562
      %v735 = vpop.f32.mrf.mxu0
      %v736 = vadd.f32 %v671, %v735
      %737 = vmatmul.f32.gmra.mxu0 %v563
      %v738 = vpop.f32.mrf.mxu0
      %v739 = vadd.f32 %v674, %v738
      %740 = vmatmul.f32.gmra.mxu0 %v564
      %v741 = vpop.f32.mrf.mxu0
      %v742 = vadd.f32 %v677, %v741
      %743 = vmatmul.f32.gmra.mxu0 %v565
      %v744 = vpop.f32.mrf.mxu0
      %v745 = vadd.f32 %v680, %v744
      %746 = vmatmul.f32.gmra.mxu0 %v566
      %v747 = vpop.f32.mrf.mxu0
      %v748 = vadd.f32 %v683, %v747
      %749 = vmatmul.f32.gmra.mxu0 %v567
      %v750 = vpop.f32.mrf.mxu0
      %v751 = vadd.f32 %v686, %v750
      %752 = vmatmul.f32.gmra.mxu0 %v568
      %v753 = vpop.f32.mrf.mxu0
      %v754 = vadd.f32 %v689, %v753
      %755 = vmatmul.f32.gmra.mxu0 %v569
      %v756 = vpop.f32.mrf.mxu0
      %v757 = vadd.f32 %v692, %v756
      %758 = vmatmul.f32.gmra.mxu0 %v570
      %v759 = vpop.f32.mrf.mxu0
      %v760 = vadd.f32 %v695, %v759
      %761 = vmatmul.f32.gmra.mxu0 %v571
      %v762 = vpop.f32.mrf.mxu0
      %v763 = vadd.f32 %v698, %v762
      %764 = vmatmul.f32.gmra.mxu0 %v572
      %v765 = vpop.f32.mrf.mxu0
      %v766 = vadd.f32 %v701, %v765
      %767 = vdwg.mxu0
      %v768 = vmax.f32 %v721, 0.0
      %v769 = vmax.f32 %v724, 0.0
      %v770 = vmax.f32 %v727, 0.0
      %v771 = vmax.f32 %v730, 0.0
      %v772 = vmax.f32 %v733, 0.0
      %v773 = vmax.f32 %v736, 0.0
      %v774 = vmax.f32 %v739, 0.0
      %v775 = vmax.f32 %v742, 0.0
      %v776 = vmax.f32 %v745, 0.0
      %v777 = vmax.f32 %v748, 0.0
      %v778 = vmax.f32 %v751, 0.0
      %v779 = vmax.f32 %v754, 0.0
      %v780 = vmax.f32 %v757, 0.0
      %v781 = vmax.f32 %v760, 0.0
      %v782 = vmax.f32 %v763, 0.0
      %v783 = vmax.f32 %v766, 0.0
      %v784 = vld [vmem:[%s2] sm:$0xff]
      %v785 = vld [vmem:[%s2 + $0x8] sm:$0xff]
      %v786 = vld [vmem:[%s2 + $0x10] sm:$0xff]
      %v787 = vld [vmem:[%s2 + $0x18] sm:$0xff]
      %v788 = vld [vmem:[%s2 + $0x20] sm:$0xff]
      %v789 = vld [vmem:[%s2 + $0x28] sm:$0xff]
      %v790 = vld [vmem:[%s2 + $0x30] sm:$0xff]
      %v791 = vld [vmem:[%s2 + $0x38] sm:$0xff]
      %v792 = vld [vmem:[%s2 + $0x40] sm:$0xff]
      %v793 = vld [vmem:[%s2 + $0x48] sm:$0xff]
      %v794 = vld [vmem:[%s2 + $0x50] sm:$0xff]
      %v795 = vld [vmem:[%s2 + $0x58] sm:$0xff]
      %v796 = vld [vmem:[%s2 + $0x60] sm:$0xff]
      %v797 = vld [vmem:[%s2 + $0x68] sm:$0xff]
      %v798 = vld [vmem:[%s2 + $0x70] sm:$0xff]
      %v799 = vld [vmem:[%s2 + $0x78] sm:$0xff]
      %v800 = vld [vmem:[%s2 + $0x80] sm:$0xff]
      %v801 = vld [vmem:[%s2 + $0x88] sm:$0xff]
      %v802 = vld [vmem:[%s2 + $0x90] sm:$0xff]
      %v803 = vld [vmem:[%s2 + $0x98] sm:$0xff]
      %v804 = vld [vmem:[%s2 + $0xa0] sm:$0xff]
      %v805 = vld [vmem:[%s2 + $0xa8] sm:$0xff]
      %v806 = vld [vmem:[%s2 + $0xb0] sm:$0xff]
      %v807 = vld [vmem:[%s2 + $0xb8] sm:$0xff]
      %v808 = vld [vmem:[%s2 + $0xc0] sm:$0xff]
      %v809 = vld [vmem:[%s2 + $0xc8] sm:$0xff]
      %v810 = vld [vmem:[%s2 + $0xd0] sm:$0xff]
      %v811 = vld [vmem:[%s2 + $0xd8] sm:$0xff]
      %v812 = vld [vmem:[%s2 + $0xe0] sm:$0xff]
      %v813 = vld [vmem:[%s2 + $0xe8] sm:$0xff]
      %v814 = vld [vmem:[%s2 + $0xf0] sm:$0xff]
      %v815 = vld [vmem:[%s2 + $0xf8] sm:$0xff]
      %v816 = vld [vmem:[%s2 + $0x100] sm:$0xff]
      %v817 = vld [vmem:[%s2 + $0x108] sm:$0xff]
      %v818 = vld [vmem:[%s2 + $0x110] sm:$0xff]
      %v819 = vld [vmem:[%s2 + $0x118] sm:$0xff]
      %v820 = vld [vmem:[%s2 + $0x120] sm:$0xff]
      %v821 = vld [vmem:[%s2 + $0x128] sm:$0xff]
      %v822 = vld [vmem:[%s2 + $0x130] sm:$0xff]
      %v823 = vld [vmem:[%s2 + $0x138] sm:$0xff]
      %v824 = vld [vmem:[%s2 + $0x140] sm:$0xff]
      %v825 = vld [vmem:[%s2 + $0x148] sm:$0xff]
      %v826 = vld [vmem:[%s2 + $0x150] sm:$0xff]
      %v827 = vld [vmem:[%s2 + $0x158] sm:$0xff]
      %v828 = vld [vmem:[%s2 + $0x160] sm:$0xff]
      %v829 = vld [vmem:[%s2 + $0x168] sm:$0xff]
      %v830 = vld [vmem:[%s2 + $0x170] sm:$0xff]
      %v831 = vld [vmem:[%s2 + $0x178] sm:$0xff]
      %v832 = vrot.slane %v768, 7
      %v833 = vrot.slane %v769, 7
      %v834 = vrot.slane %v770, 7
      %v835 = vrot.slane %v771, 7
      %v836 = vrot.slane %v772, 7
      %v837 = vrot.slane %v773, 7
      %v838 = vrot.slane %v774, 7
      %v839 = vrot.slane %v775, 7
      %v840 = vrot.slane %v776, 7
      %v841 = vrot.slane %v777, 7
      %v842 = vrot.slane %v778, 7
      %v843 = vrot.slane %v779, 7
      %v844 = vrot.slane %v780, 7
      %v845 = vrot.slane %v781, 7
      %v846 = vrot.slane %v782, 7
      %v847 = vrot.slane %v783, 7
      %v848 = vsel %vm427, %v846, %v847
      %v849 = vsel %vm427, %v845, %v846
      %v850 = vsel %vm427, %v844, %v845
      %v851 = vsel %vm427, %v843, %v844
      %v852 = vsel %vm427, %v842, %v843
      %v853 = vsel %vm427, %v841, %v842
      %v854 = vsel %vm427, %v840, %v841
      %v855 = vsel %vm427, %v839, %v840
      %v856 = vsel %vm427, %v838, %v839
      %v857 = vsel %vm427, %v837, %v838
      %v858 = vsel %vm427, %v836, %v837
      %v859 = vsel %vm427, %v835, %v836
      %v860 = vsel %vm427, %v834, %v835
      %v861 = vsel %vm427, %v833, %v834
      %v862 = vsel %vm427, %v832, %v833
      %v863 = vsel %vm427, %v847, %v832
      %v864 = vsel %vm460, %v768, %v863
      %v865 = vsel %vm461, %v769, %v862
      %v866 = vsel %vm462, %v770, %v861
      %v867 = vsel %vm463, %v771, %v860
      %v868 = vsel %vm464, %v772, %v859
      %v869 = vsel %vm465, %v773, %v858
      %v870 = vsel %vm466, %v774, %v857
      %v871 = vsel %vm467, %v775, %v856
      %v872 = vsel %vm468, %v776, %v855
      %v873 = vsel %vm469, %v777, %v854
      %v874 = vsel %vm470, %v778, %v853
      %v875 = vsel %vm471, %v779, %v852
      %v876 = vsel %vm472, %v780, %v851
      %v877 = vsel %vm473, %v781, %v850
      %v878 = vsel %vm474, %v782, %v849
      %v879 = vsel %vm475, %v783, %v848
      %v880 = vrot.slane %v768, 1
      %v881 = vrot.slane %v769, 1
      %v882 = vrot.slane %v770, 1
      %v883 = vrot.slane %v771, 1
      %v884 = vrot.slane %v772, 1
      %v885 = vrot.slane %v773, 1
      %v886 = vrot.slane %v774, 1
      %v887 = vrot.slane %v775, 1
      %v888 = vrot.slane %v776, 1
      %v889 = vrot.slane %v777, 1
      %v890 = vrot.slane %v778, 1
      %v891 = vrot.slane %v779, 1
      %v892 = vrot.slane %v780, 1
      %v893 = vrot.slane %v781, 1
      %v894 = vrot.slane %v782, 1
      %v895 = vrot.slane %v783, 1
      %v896 = vsel %vm508, %v894, %v895
      %v897 = vsel %vm508, %v893, %v894
      %v898 = vsel %vm508, %v892, %v893
      %v899 = vsel %vm508, %v891, %v892
      %v900 = vsel %vm508, %v890, %v891
      %v901 = vsel %vm508, %v889, %v890
      %v902 = vsel %vm508, %v888, %v889
      %v903 = vsel %vm508, %v887, %v888
      %v904 = vsel %vm508, %v886, %v887
      %v905 = vsel %vm508, %v885, %v886
      %v906 = vsel %vm508, %v884, %v885
      %v907 = vsel %vm508, %v883, %v884
      %v908 = vsel %vm508, %v882, %v883
      %v909 = vsel %vm508, %v881, %v882
      %v910 = vsel %vm508, %v880, %v881
      %v911 = vsel %vm508, %v895, %v880
      %v912 = vsel %vm541, %v768, %v910
      %v913 = vsel %vm542, %v769, %v909
      %v914 = vsel %vm543, %v770, %v908
      %v915 = vsel %vm544, %v771, %v907
      %v916 = vsel %vm545, %v772, %v906
      %v917 = vsel %vm546, %v773, %v905
      %v918 = vsel %vm547, %v774, %v904
      %v919 = vsel %vm548, %v775, %v903
      %v920 = vsel %vm549, %v776, %v902
      %v921 = vsel %vm550, %v777, %v901
      %v922 = vsel %vm551, %v778, %v900
      %v923 = vsel %vm552, %v779, %v899
      %v924 = vsel %vm553, %v780, %v898
      %v925 = vsel %vm554, %v781, %v897
      %v926 = vsel %vm555, %v782, %v896
      %v927 = vsel %vm556, %v783, %v911
      %928 = vmatpush.msra.mxu0 %v799
      %929 = vmatpush.msra.mxu0 %v798
      %930 = vmatpush.msra.mxu0 %v797
      %931 = vmatpush.msra.mxu0 %v796
      %932 = vmatpush.msra.mxu0 %v795
      %933 = vmatpush.msra.mxu0 %v794
      %934 = vmatpush.msra.mxu0 %v793
      %935 = vmatpush.msra.mxu0 %v792
      %936 = vmatpush.msra.mxu0 %v791
      %937 = vmatpush.msra.mxu0 %v790
      %938 = vmatpush.msra.mxu0 %v789
      %939 = vmatpush.msra.mxu0 %v788
      %940 = vmatpush.msra.mxu0 %v787
      %941 = vmatpush.msra.mxu0 %v786
      %942 = vmatpush.msra.mxu0 %v785
      %943 = vmatpush.msra.mxu0 %v784
      %944 = vmatmul.f32.gmra.mxu0 %v864
      %v945 = vpop.f32.mrf.mxu0
      %v946 = vadd.f32 0.0, %v945
      %947 = vmatmul.f32.gmra.mxu0 %v865
      %v948 = vpop.f32.mrf.mxu0
      %v949 = vadd.f32 0.0, %v948
      %950 = vmatmul.f32.gmra.mxu0 %v866
      %v951 = vpop.f32.mrf.mxu0
      %v952 = vadd.f32 0.0, %v951
      %953 = vmatmul.f32.gmra.mxu0 %v867
      %v954 = vpop.f32.mrf.mxu0
      %v955 = vadd.f32 0.0, %v954
      %956 = vmatmul.f32.gmra.mxu0 %v868
      %v957 = vpop.f32.mrf.mxu0
      %v958 = vadd.f32 0.0, %v957
      %959 = vmatmul.f32.gmra.mxu0 %v869
      %v960 = vpop.f32.mrf.mxu0
      %v961 = vadd.f32 0.0, %v960
      %962 = vmatmul.f32.gmra.mxu0 %v870
      %v963 = vpop.f32.mrf.mxu0
      %v964 = vadd.f32 0.0, %v963
      %965 = vmatmul.f32.gmra.mxu0 %v871
      %v966 = vpop.f32.mrf.mxu0
      %v967 = vadd.f32 0.0, %v966
      %968 = vmatmul.f32.gmra.mxu0 %v872
      %v969 = vpop.f32.mrf.mxu0
      %v970 = vadd.f32 0.0, %v969
      %971 = vmatmul.f32.gmra.mxu0 %v873
      %v972 = vpop.f32.mrf.mxu0
      %v973 = vadd.f32 0.0, %v972
      %974 = vmatmul.f32.gmra.mxu0 %v874
      %v975 = vpop.f32.mrf.mxu0
      %v976 = vadd.f32 0.0, %v975
      %977 = vmatmul.f32.gmra.mxu0 %v875
      %v978 = vpop.f32.mrf.mxu0
      %v979 = vadd.f32 0.0, %v978
      %980 = vmatmul.f32.gmra.mxu0 %v876
      %v981 = vpop.f32.mrf.mxu0
      %v982 = vadd.f32 0.0, %v981
      %983 = vmatmul.f32.gmra.mxu0 %v877
      %v984 = vpop.f32.mrf.mxu0
      %v985 = vadd.f32 0.0, %v984
      %986 = vmatmul.f32.gmra.mxu0 %v878
      %v987 = vpop.f32.mrf.mxu0
      %v988 = vadd.f32 0.0, %v987
      %989 = vmatmul.f32.gmra.mxu0 %v879
      %v990 = vpop.f32.mrf.mxu0
      %v991 = vadd.f32 0.0, %v990
      %992 = vdwg.mxu0
      %993 = vmatpush.msra.mxu0 %v815
      %994 = vmatpush.msra.mxu0 %v814
      %995 = vmatpush.msra.mxu0 %v813
      %996 = vmatpush.msra.mxu0 %v812
      %997 = vmatpush.msra.mxu0 %v811
      %998 = vmatpush.msra.mxu0 %v810
      %999 = vmatpush.msra.mxu0 %v809
      %1000 = vmatpush.msra.mxu0 %v808
      %1001 = vmatpush.msra.mxu0 %v807
      %1002 = vmatpush.msra.mxu0 %v806
      %1003 = vmatpush.msra.mxu0 %v805
      %1004 = vmatpush.msra.mxu0 %v804
      %1005 = vmatpush.msra.mxu0 %v803
      %1006 = vmatpush.msra.mxu0 %v802
      %1007 = vmatpush.msra.mxu0 %v801
      %1008 = vmatpush.msra.mxu0 %v800
      %1009 = vmatmul.f32.gmra.mxu0 %v768
      %v1010 = vpop.f32.mrf.mxu0
      %v1011 = vadd.f32 %v946, %v1010
      %1012 = vmatmul.f32.gmra.mxu0 %v769
      %v1013 = vpop.f32.mrf.mxu0
      %v1014 = vadd.f32 %v949, %v1013
      %1015 = vmatmul.f32.gmra.mxu0 %v770
      %v1016 = vpop.f32.mrf.mxu0
      %v1017 = vadd.f32 %v952, %v1016
      %1018 = vmatmul.f32.gmra.mxu0 %v771
      %v1019 = vpop.f32.mrf.mxu0
      %v1020 = vadd.f32 %v955, %v1019
      %1021 = vmatmul.f32.gmra.mxu0 %v772
      %v1022 = vpop.f32.mrf.mxu0
      %v1023 = vadd.f32 %v958, %v1022
      %1024 = vmatmul.f32.gmra.mxu0 %v773
      %v1025 = vpop.f32.mrf.mxu0
      %v1026 = vadd.f32 %v961, %v1025
      %1027 = vmatmul.f32.gmra.mxu0 %v774
      %v1028 = vpop.f32.mrf.mxu0
      %v1029 = vadd.f32 %v964, %v1028
      %1030 = vmatmul.f32.gmra.mxu0 %v775
      %v1031 = vpop.f32.mrf.mxu0
      %v1032 = vadd.f32 %v967, %v1031
      %1033 = vmatmul.f32.gmra.mxu0 %v776
      %v1034 = vpop.f32.mrf.mxu0
      %v1035 = vadd.f32 %v970, %v1034
      %1036 = vmatmul.f32.gmra.mxu0 %v777
      %v1037 = vpop.f32.mrf.mxu0
      %v1038 = vadd.f32 %v973, %v1037
      %1039 = vmatmul.f32.gmra.mxu0 %v778
      %v1040 = vpop.f32.mrf.mxu0
      %v1041 = vadd.f32 %v976, %v1040
      %1042 = vmatmul.f32.gmra.mxu0 %v779
      %v1043 = vpop.f32.mrf.mxu0
      %v1044 = vadd.f32 %v979, %v1043
      %1045 = vmatmul.f32.gmra.mxu0 %v780
      %v1046 = vpop.f32.mrf.mxu0
      %v1047 = vadd.f32 %v982, %v1046
      %1048 = vmatmul.f32.gmra.mxu0 %v781
      %v1049 = vpop.f32.mrf.mxu0
      %v1050 = vadd.f32 %v985, %v1049
      %1051 = vmatmul.f32.gmra.mxu0 %v782
      %v1052 = vpop.f32.mrf.mxu0
      %v1053 = vadd.f32 %v988, %v1052
      %1054 = vmatmul.f32.gmra.mxu0 %v783
      %v1055 = vpop.f32.mrf.mxu0
      %v1056 = vadd.f32 %v991, %v1055
      %1057 = vdwg.mxu0
      %1058 = vmatpush.msra.mxu0 %v831
      %1059 = vmatpush.msra.mxu0 %v830
      %1060 = vmatpush.msra.mxu0 %v829
      %1061 = vmatpush.msra.mxu0 %v828
      %1062 = vmatpush.msra.mxu0 %v827
      %1063 = vmatpush.msra.mxu0 %v826
      %1064 = vmatpush.msra.mxu0 %v825
      %1065 = vmatpush.msra.mxu0 %v824
      %1066 = vmatpush.msra.mxu0 %v823
      %1067 = vmatpush.msra.mxu0 %v822
      %1068 = vmatpush.msra.mxu0 %v821
      %1069 = vmatpush.msra.mxu0 %v820
      %1070 = vmatpush.msra.mxu0 %v819
      %1071 = vmatpush.msra.mxu0 %v818
      %1072 = vmatpush.msra.mxu0 %v817
      %1073 = vmatpush.msra.mxu0 %v816
      %1074 = vmatmul.f32.gmra.mxu0 %v912
      %v1075 = vpop.f32.mrf.mxu0
      %v1076 = vadd.f32 %v1011, %v1075
      %1077 = vmatmul.f32.gmra.mxu0 %v913
      %v1078 = vpop.f32.mrf.mxu0
      %v1079 = vadd.f32 %v1014, %v1078
      %1080 = vmatmul.f32.gmra.mxu0 %v914
      %v1081 = vpop.f32.mrf.mxu0
      %v1082 = vadd.f32 %v1017, %v1081
      %1083 = vmatmul.f32.gmra.mxu0 %v915
      %v1084 = vpop.f32.mrf.mxu0
      %v1085 = vadd.f32 %v1020, %v1084
      %1086 = vmatmul.f32.gmra.mxu0 %v916
      %v1087 = vpop.f32.mrf.mxu0
      %v1088 = vadd.f32 %v1023, %v1087
      %1089 = vmatmul.f32.gmra.mxu0 %v917
      %v1090 = vpop.f32.mrf.mxu0
      %v1091 = vadd.f32 %v1026, %v1090
      %1092 = vmatmul.f32.gmra.mxu0 %v918
      %v1093 = vpop.f32.mrf.mxu0
      %v1094 = vadd.f32 %v1029, %v1093
      %1095 = vmatmul.f32.gmra.mxu0 %v919
      %v1096 = vpop.f32.mrf.mxu0
      %v1097 = vadd.f32 %v1032, %v1096
      %1098 = vmatmul.f32.gmra.mxu0 %v920
      %v1099 = vpop.f32.mrf.mxu0
      %v1100 = vadd.f32 %v1035, %v1099
      %1101 = vmatmul.f32.gmra.mxu0 %v921
      %v1102 = vpop.f32.mrf.mxu0
      %v1103 = vadd.f32 %v1038, %v1102
      %1104 = vmatmul.f32.gmra.mxu0 %v922
      %v1105 = vpop.f32.mrf.mxu0
      %v1106 = vadd.f32 %v1041, %v1105
      %1107 = vmatmul.f32.gmra.mxu0 %v923
      %v1108 = vpop.f32.mrf.mxu0
      %v1109 = vadd.f32 %v1044, %v1108
      %1110 = vmatmul.f32.gmra.mxu0 %v924
      %v1111 = vpop.f32.mrf.mxu0
      %v1112 = vadd.f32 %v1047, %v1111
      %1113 = vmatmul.f32.gmra.mxu0 %v925
      %v1114 = vpop.f32.mrf.mxu0
      %v1115 = vadd.f32 %v1050, %v1114
      %1116 = vmatmul.f32.gmra.mxu0 %v926
      %v1117 = vpop.f32.mrf.mxu0
      %v1118 = vadd.f32 %v1053, %v1117
      %1119 = vmatmul.f32.gmra.mxu0 %v927
      %v1120 = vpop.f32.mrf.mxu0
      %v1121 = vadd.f32 %v1056, %v1120
      %1122 = vdwg.mxu0
      %v1123 = vmax.f32 %v1076, 0.0
      %v1124 = vmax.f32 %v1079, 0.0
      %v1125 = vmax.f32 %v1082, 0.0
      %v1126 = vmax.f32 %v1085, 0.0
      %v1127 = vmax.f32 %v1088, 0.0
      %v1128 = vmax.f32 %v1091, 0.0
      %v1129 = vmax.f32 %v1094, 0.0
      %v1130 = vmax.f32 %v1097, 0.0
      %v1131 = vmax.f32 %v1100, 0.0
      %v1132 = vmax.f32 %v1103, 0.0
      %v1133 = vmax.f32 %v1106, 0.0
      %v1134 = vmax.f32 %v1109, 0.0
      %v1135 = vmax.f32 %v1112, 0.0
      %v1136 = vmax.f32 %v1115, 0.0
      %v1137 = vmax.f32 %v1118, 0.0
      %v1138 = vmax.f32 %v1121, 0.0
      %s1139 = scalar_lea.vmem %s2, 384
      %v1140 = vld [vmem:[%s1139] sm:$0xff]
      %v1141 = vld [vmem:[%s1139 + $0x8] sm:$0xff]
      %v1142 = vld [vmem:[%s1139 + $0x10] sm:$0xff]
      %v1143 = vld [vmem:[%s1139 + $0x18] sm:$0xff]
      %v1144 = vld [vmem:[%s1139 + $0x20] sm:$0xff]
      %v1145 = vld [vmem:[%s1139 + $0x28] sm:$0xff]
      %v1146 = vld [vmem:[%s1139 + $0x30] sm:$0xff]
      %v1147 = vld [vmem:[%s1139 + $0x38] sm:$0xff]
      %v1148 = vld [vmem:[%s1139 + $0x40] sm:$0xff]
      %v1149 = vld [vmem:[%s1139 + $0x48] sm:$0xff]
      %v1150 = vld [vmem:[%s1139 + $0x50] sm:$0xff]
      %v1151 = vld [vmem:[%s1139 + $0x58] sm:$0xff]
      %v1152 = vld [vmem:[%s1139 + $0x60] sm:$0xff]
      %v1153 = vld [vmem:[%s1139 + $0x68] sm:$0xff]
      %v1154 = vld [vmem:[%s1139 + $0x70] sm:$0xff]
      %v1155 = vld [vmem:[%s1139 + $0x78] sm:$0xff]
      %v1156 = vld [vmem:[%s1139 + $0x80] sm:$0xff]
      %v1157 = vld [vmem:[%s1139 + $0x88] sm:$0xff]
      %v1158 = vld [vmem:[%s1139 + $0x90] sm:$0xff]
      %v1159 = vld [vmem:[%s1139 + $0x98] sm:$0xff]
      %v1160 = vld [vmem:[%s1139 + $0xa0] sm:$0xff]
      %v1161 = vld [vmem:[%s1139 + $0xa8] sm:$0xff]
      %v1162 = vld [vmem:[%s1139 + $0xb0] sm:$0xff]
      %v1163 = vld [vmem:[%s1139 + $0xb8] sm:$0xff]
      %v1164 = vld [vmem:[%s1139 + $0xc0] sm:$0xff]
      %v1165 = vld [vmem:[%s1139 + $0xc8] sm:$0xff]
      %v1166 = vld [vmem:[%s1139 + $0xd0] sm:$0xff]
      %v1167 = vld [vmem:[%s1139 + $0xd8] sm:$0xff]
      %v1168 = vld [vmem:[%s1139 + $0xe0] sm:$0xff]
      %v1169 = vld [vmem:[%s1139 + $0xe8] sm:$0xff]
      %v1170 = vld [vmem:[%s1139 + $0xf0] sm:$0xff]
      %v1171 = vld [vmem:[%s1139 + $0xf8] sm:$0xff]
      %v1172 = vld [vmem:[%s1139 + $0x100] sm:$0xff]
      %v1173 = vld [vmem:[%s1139 + $0x108] sm:$0xff]
      %v1174 = vld [vmem:[%s1139 + $0x110] sm:$0xff]
      %v1175 = vld [vmem:[%s1139 + $0x118] sm:$0xff]
      %v1176 = vld [vmem:[%s1139 + $0x120] sm:$0xff]
      %v1177 = vld [vmem:[%s1139 + $0x128] sm:$0xff]
      %v1178 = vld [vmem:[%s1139 + $0x130] sm:$0xff]
      %v1179 = vld [vmem:[%s1139 + $0x138] sm:$0xff]
      %v1180 = vld [vmem:[%s1139 + $0x140] sm:$0xff]
      %v1181 = vld [vmem:[%s1139 + $0x148] sm:$0xff]
      %v1182 = vld [vmem:[%s1139 + $0x150] sm:$0xff]
      %v1183 = vld [vmem:[%s1139 + $0x158] sm:$0xff]
      %v1184 = vld [vmem:[%s1139 + $0x160] sm:$0xff]
      %v1185 = vld [vmem:[%s1139 + $0x168] sm:$0xff]
      %v1186 = vld [vmem:[%s1139 + $0x170] sm:$0xff]
      %v1187 = vld [vmem:[%s1139 + $0x178] sm:$0xff]
      %v1188 = vrot.slane %v1123, 7
      %v1189 = vrot.slane %v1124, 7
      %v1190 = vrot.slane %v1125, 7
      %v1191 = vrot.slane %v1126, 7
      %v1192 = vrot.slane %v1127, 7
      %v1193 = vrot.slane %v1128, 7
      %v1194 = vrot.slane %v1129, 7
      %v1195 = vrot.slane %v1130, 7
      %v1196 = vrot.slane %v1131, 7
      %v1197 = vrot.slane %v1132, 7
      %v1198 = vrot.slane %v1133, 7
      %v1199 = vrot.slane %v1134, 7
      %v1200 = vrot.slane %v1135, 7
      %v1201 = vrot.slane %v1136, 7
      %v1202 = vrot.slane %v1137, 7
      %v1203 = vrot.slane %v1138, 7
      %v1204 = vsel %vm427, %v1202, %v1203
      %v1205 = vsel %vm427, %v1201, %v1202
      %v1206 = vsel %vm427, %v1200, %v1201
      %v1207 = vsel %vm427, %v1199, %v1200
      %v1208 = vsel %vm427, %v1198, %v1199
      %v1209 = vsel %vm427, %v1197, %v1198
      %v1210 = vsel %vm427, %v1196, %v1197
      %v1211 = vsel %vm427, %v1195, %v1196
      %v1212 = vsel %vm427, %v1194, %v1195
      %v1213 = vsel %vm427, %v1193, %v1194
      %v1214 = vsel %vm427, %v1192, %v1193
      %v1215 = vsel %vm427, %v1191, %v1192
      %v1216 = vsel %vm427, %v1190, %v1191
      %v1217 = vsel %vm427, %v1189, %v1190
      %v1218 = vsel %vm427, %v1188, %v1189
      %v1219 = vsel %vm427, %v1203, %v1188
      %v1220 = vsel %vm460, %v1123, %v1219
      %v1221 = vsel %vm461, %v1124, %v1218
      %v1222 = vsel %vm462, %v1125, %v1217
      %v1223 = vsel %vm463, %v1126, %v1216
      %v1224 = vsel %vm464, %v1127, %v1215
      %v1225 = vsel %vm465, %v1128, %v1214
      %v1226 = vsel %vm466, %v1129, %v1213
      %v1227 = vsel %vm467, %v1130, %v1212
      %v1228 = vsel %vm468, %v1131, %v1211
      %v1229 = vsel %vm469, %v1132, %v1210
      %v1230 = vsel %vm470, %v1133, %v1209
      %v1231 = vsel %vm471, %v1134, %v1208
      %v1232 = vsel %vm472, %v1135, %v1207
      %v1233 = vsel %vm473, %v1136, %v1206
      %v1234 = vsel %vm474, %v1137, %v1205
      %v1235 = vsel %vm475, %v1138, %v1204
      %v1236 = vrot.slane %v1123, 1
      %v1237 = vrot.slane %v1124, 1
      %v1238 = vrot.slane %v1125, 1
      %v1239 = vrot.slane %v1126, 1
      %v1240 = vrot.slane %v1127, 1
      %v1241 = vrot.slane %v1128, 1
      %v1242 = vrot.slane %v1129, 1
      %v1243 = vrot.slane %v1130, 1
      %v1244 = vrot.slane %v1131, 1
      %v1245 = vrot.slane %v1132, 1
      %v1246 = vrot.slane %v1133, 1
      %v1247 = vrot.slane %v1134, 1
      %v1248 = vrot.slane %v1135, 1
      %v1249 = vrot.slane %v1136, 1
      %v1250 = vrot.slane %v1137, 1
      %v1251 = vrot.slane %v1138, 1
      %v1252 = vsel %vm508, %v1250, %v1251
      %v1253 = vsel %vm508, %v1249, %v1250
      %v1254 = vsel %vm508, %v1248, %v1249
      %v1255 = vsel %vm508, %v1247, %v1248
      %v1256 = vsel %vm508, %v1246, %v1247
      %v1257 = vsel %vm508, %v1245, %v1246
      %v1258 = vsel %vm508, %v1244, %v1245
      %v1259 = vsel %vm508, %v1243, %v1244
      %v1260 = vsel %vm508, %v1242, %v1243
      %v1261 = vsel %vm508, %v1241, %v1242
      %v1262 = vsel %vm508, %v1240, %v1241
      %v1263 = vsel %vm508, %v1239, %v1240
      %v1264 = vsel %vm508, %v1238, %v1239
      %v1265 = vsel %vm508, %v1237, %v1238
      %v1266 = vsel %vm508, %v1236, %v1237
      %v1267 = vsel %vm508, %v1251, %v1236
      %v1268 = vsel %vm541, %v1123, %v1266
      %v1269 = vsel %vm542, %v1124, %v1265
      %v1270 = vsel %vm543, %v1125, %v1264
      %v1271 = vsel %vm544, %v1126, %v1263
      %v1272 = vsel %vm545, %v1127, %v1262
      %v1273 = vsel %vm546, %v1128, %v1261
      %v1274 = vsel %vm547, %v1129, %v1260
      %v1275 = vsel %vm548, %v1130, %v1259
      %v1276 = vsel %vm549, %v1131, %v1258
      %v1277 = vsel %vm550, %v1132, %v1257
      %v1278 = vsel %vm551, %v1133, %v1256
      %v1279 = vsel %vm552, %v1134, %v1255
      %v1280 = vsel %vm553, %v1135, %v1254
      %v1281 = vsel %vm554, %v1136, %v1253
      %v1282 = vsel %vm555, %v1137, %v1252
      %v1283 = vsel %vm556, %v1138, %v1267
      %1284 = vmatpush.msra.mxu0 %v1155
      %1285 = vmatpush.msra.mxu0 %v1154
      %1286 = vmatpush.msra.mxu0 %v1153
      %1287 = vmatpush.msra.mxu0 %v1152
      %1288 = vmatpush.msra.mxu0 %v1151
      %1289 = vmatpush.msra.mxu0 %v1150
      %1290 = vmatpush.msra.mxu0 %v1149
      %1291 = vmatpush.msra.mxu0 %v1148
      %1292 = vmatpush.msra.mxu0 %v1147
      %1293 = vmatpush.msra.mxu0 %v1146
      %1294 = vmatpush.msra.mxu0 %v1145
      %1295 = vmatpush.msra.mxu0 %v1144
      %1296 = vmatpush.msra.mxu0 %v1143
      %1297 = vmatpush.msra.mxu0 %v1142
      %1298 = vmatpush.msra.mxu0 %v1141
      %1299 = vmatpush.msra.mxu0 %v1140
      %1300 = vmatmul.f32.gmra.mxu0 %v1220
      %v1301 = vpop.f32.mrf.mxu0
      %v1302 = vadd.f32 0.0, %v1301
      %1303 = vmatmul.f32.gmra.mxu0 %v1221
      %v1304 = vpop.f32.mrf.mxu0
      %v1305 = vadd.f32 0.0, %v1304
      %1306 = vmatmul.f32.gmra.mxu0 %v1222
      %v1307 = vpop.f32.mrf.mxu0
      %v1308 = vadd.f32 0.0, %v1307
      %1309 = vmatmul.f32.gmra.mxu0 %v1223
      %v1310 = vpop.f32.mrf.mxu0
      %v1311 = vadd.f32 0.0, %v1310
      %1312 = vmatmul.f32.gmra.mxu0 %v1224
      %v1313 = vpop.f32.mrf.mxu0
      %v1314 = vadd.f32 0.0, %v1313
      %1315 = vmatmul.f32.gmra.mxu0 %v1225
      %v1316 = vpop.f32.mrf.mxu0
      %v1317 = vadd.f32 0.0, %v1316
      %1318 = vmatmul.f32.gmra.mxu0 %v1226
      %v1319 = vpop.f32.mrf.mxu0
      %v1320 = vadd.f32 0.0, %v1319
      %1321 = vmatmul.f32.gmra.mxu0 %v1227
      %v1322 = vpop.f32.mrf.mxu0
      %v1323 = vadd.f32 0.0, %v1322
      %1324 = vmatmul.f32.gmra.mxu0 %v1228
      %v1325 = vpop.f32.mrf.mxu0
      %v1326 = vadd.f32 0.0, %v1325
      %1327 = vmatmul.f32.gmra.mxu0 %v1229
      %v1328 = vpop.f32.mrf.mxu0
      %v1329 = vadd.f32 0.0, %v1328
      %1330 = vmatmul.f32.gmra.mxu0 %v1230
      %v1331 = vpop.f32.mrf.mxu0
      %v1332 = vadd.f32 0.0, %v1331
      %1333 = vmatmul.f32.gmra.mxu0 %v1231
      %v1334 = vpop.f32.mrf.mxu0
      %v1335 = vadd.f32 0.0, %v1334
      %1336 = vmatmul.f32.gmra.mxu0 %v1232
      %v1337 = vpop.f32.mrf.mxu0
      %v1338 = vadd.f32 0.0, %v1337
      %1339 = vmatmul.f32.gmra.mxu0 %v1233
      %v1340 = vpop.f32.mrf.mxu0
      %v1341 = vadd.f32 0.0, %v1340
      %1342 = vmatmul.f32.gmra.mxu0 %v1234
      %v1343 = vpop.f32.mrf.mxu0
      %v1344 = vadd.f32 0.0, %v1343
      %1345 = vmatmul.f32.gmra.mxu0 %v1235
      %v1346 = vpop.f32.mrf.mxu0
      %v1347 = vadd.f32 0.0, %v1346
      %1348 = vdwg.mxu0
      %1349 = vmatpush.msra.mxu0 %v1171
      %1350 = vmatpush.msra.mxu0 %v1170
      %1351 = vmatpush.msra.mxu0 %v1169
      %1352 = vmatpush.msra.mxu0 %v1168
      %1353 = vmatpush.msra.mxu0 %v1167
      %1354 = vmatpush.msra.mxu0 %v1166
      %1355 = vmatpush.msra.mxu0 %v1165
      %1356 = vmatpush.msra.mxu0 %v1164
      %1357 = vmatpush.msra.mxu0 %v1163
      %1358 = vmatpush.msra.mxu0 %v1162
      %1359 = vmatpush.msra.mxu0 %v1161
      %1360 = vmatpush.msra.mxu0 %v1160
      %1361 = vmatpush.msra.mxu0 %v1159
      %1362 = vmatpush.msra.mxu0 %v1158
      %1363 = vmatpush.msra.mxu0 %v1157
      %1364 = vmatpush.msra.mxu0 %v1156
      %1365 = vmatmul.f32.gmra.mxu0 %v1123
      %v1366 = vpop.f32.mrf.mxu0
      %v1367 = vadd.f32 %v1302, %v1366
      %1368 = vmatmul.f32.gmra.mxu0 %v1124
      %v1369 = vpop.f32.mrf.mxu0
      %v1370 = vadd.f32 %v1305, %v1369
      %1371 = vmatmul.f32.gmra.mxu0 %v1125
      %v1372 = vpop.f32.mrf.mxu0
      %v1373 = vadd.f32 %v1308, %v1372
      %1374 = vmatmul.f32.gmra.mxu0 %v1126
      %v1375 = vpop.f32.mrf.mxu0
      %v1376 = vadd.f32 %v1311, %v1375
      %1377 = vmatmul.f32.gmra.mxu0 %v1127
      %v1378 = vpop.f32.mrf.mxu0
      %v1379 = vadd.f32 %v1314, %v1378
      %1380 = vmatmul.f32.gmra.mxu0 %v1128
      %v1381 = vpop.f32.mrf.mxu0
      %v1382 = vadd.f32 %v1317, %v1381
      %1383 = vmatmul.f32.gmra.mxu0 %v1129
      %v1384 = vpop.f32.mrf.mxu0
      %v1385 = vadd.f32 %v1320, %v1384
      %1386 = vmatmul.f32.gmra.mxu0 %v1130
      %v1387 = vpop.f32.mrf.mxu0
      %v1388 = vadd.f32 %v1323, %v1387
      %1389 = vmatmul.f32.gmra.mxu0 %v1131
      %v1390 = vpop.f32.mrf.mxu0
      %v1391 = vadd.f32 %v1326, %v1390
      %1392 = vmatmul.f32.gmra.mxu0 %v1132
      %v1393 = vpop.f32.mrf.mxu0
      %v1394 = vadd.f32 %v1329, %v1393
      %1395 = vmatmul.f32.gmra.mxu0 %v1133
      %v1396 = vpop.f32.mrf.mxu0
      %v1397 = vadd.f32 %v1332, %v1396
      %1398 = vmatmul.f32.gmra.mxu0 %v1134
      %v1399 = vpop.f32.mrf.mxu0
      %v1400 = vadd.f32 %v1335, %v1399
      %1401 = vmatmul.f32.gmra.mxu0 %v1135
      %v1402 = vpop.f32.mrf.mxu0
      %v1403 = vadd.f32 %v1338, %v1402
      %1404 = vmatmul.f32.gmra.mxu0 %v1136
      %v1405 = vpop.f32.mrf.mxu0
      %v1406 = vadd.f32 %v1341, %v1405
      %1407 = vmatmul.f32.gmra.mxu0 %v1137
      %v1408 = vpop.f32.mrf.mxu0
      %v1409 = vadd.f32 %v1344, %v1408
      %1410 = vmatmul.f32.gmra.mxu0 %v1138
      %v1411 = vpop.f32.mrf.mxu0
      %v1412 = vadd.f32 %v1347, %v1411
      %1413 = vdwg.mxu0
      %1414 = vmatpush.msra.mxu0 %v1187
      %1415 = vmatpush.msra.mxu0 %v1186
      %1416 = vmatpush.msra.mxu0 %v1185
      %1417 = vmatpush.msra.mxu0 %v1184
      %1418 = vmatpush.msra.mxu0 %v1183
      %1419 = vmatpush.msra.mxu0 %v1182
      %1420 = vmatpush.msra.mxu0 %v1181
      %1421 = vmatpush.msra.mxu0 %v1180
      %1422 = vmatpush.msra.mxu0 %v1179
      %1423 = vmatpush.msra.mxu0 %v1178
      %1424 = vmatpush.msra.mxu0 %v1177
      %1425 = vmatpush.msra.mxu0 %v1176
      %1426 = vmatpush.msra.mxu0 %v1175
      %1427 = vmatpush.msra.mxu0 %v1174
      %1428 = vmatpush.msra.mxu0 %v1173
      %1429 = vmatpush.msra.mxu0 %v1172
      %1430 = vmatmul.f32.gmra.mxu0 %v1268
      %v1431 = vpop.f32.mrf.mxu0
      %v1432 = vadd.f32 %v1367, %v1431
      %1433 = vmatmul.f32.gmra.mxu0 %v1269
      %v1434 = vpop.f32.mrf.mxu0
      %v1435 = vadd.f32 %v1370, %v1434
      %1436 = vmatmul.f32.gmra.mxu0 %v1270
      %v1437 = vpop.f32.mrf.mxu0
      %v1438 = vadd.f32 %v1373, %v1437
      %1439 = vmatmul.f32.gmra.mxu0 %v1271
      %v1440 = vpop.f32.mrf.mxu0
      %v1441 = vadd.f32 %v1376, %v1440
      %1442 = vmatmul.f32.gmra.mxu0 %v1272
      %v1443 = vpop.f32.mrf.mxu0
      %v1444 = vadd.f32 %v1379, %v1443
      %1445 = vmatmul.f32.gmra.mxu0 %v1273
      %v1446 = vpop.f32.mrf.mxu0
      %v1447 = vadd.f32 %v1382, %v1446
      %1448 = vmatmul.f32.gmra.mxu0 %v1274
      %v1449 = vpop.f32.mrf.mxu0
      %v1450 = vadd.f32 %v1385, %v1449
      %1451 = vmatmul.f32.gmra.mxu0 %v1275
      %v1452 = vpop.f32.mrf.mxu0
      %v1453 = vadd.f32 %v1388, %v1452
      %1454 = vmatmul.f32.gmra.mxu0 %v1276
      %v1455 = vpop.f32.mrf.mxu0
      %v1456 = vadd.f32 %v1391, %v1455
      %1457 = vmatmul.f32.gmra.mxu0 %v1277
      %v1458 = vpop.f32.mrf.mxu0
      %v1459 = vadd.f32 %v1394, %v1458
      %1460 = vmatmul.f32.gmra.mxu0 %v1278
      %v1461 = vpop.f32.mrf.mxu0
      %v1462 = vadd.f32 %v1397, %v1461
      %1463 = vmatmul.f32.gmra.mxu0 %v1279
      %v1464 = vpop.f32.mrf.mxu0
      %v1465 = vadd.f32 %v1400, %v1464
      %1466 = vmatmul.f32.gmra.mxu0 %v1280
      %v1467 = vpop.f32.mrf.mxu0
      %v1468 = vadd.f32 %v1403, %v1467
      %1469 = vmatmul.f32.gmra.mxu0 %v1281
      %v1470 = vpop.f32.mrf.mxu0
      %v1471 = vadd.f32 %v1406, %v1470
      %1472 = vmatmul.f32.gmra.mxu0 %v1282
      %v1473 = vpop.f32.mrf.mxu0
      %v1474 = vadd.f32 %v1409, %v1473
      %1475 = vmatmul.f32.gmra.mxu0 %v1283
      %v1476 = vpop.f32.mrf.mxu0
      %v1477 = vadd.f32 %v1412, %v1476
      %1478 = vdwg.mxu0
      %v1479 = vmax.f32 %v1432, 0.0
      %v1480 = vmax.f32 %v1435, 0.0
      %v1481 = vmax.f32 %v1438, 0.0
      %v1482 = vmax.f32 %v1441, 0.0
      %v1483 = vmax.f32 %v1444, 0.0
      %v1484 = vmax.f32 %v1447, 0.0
      %v1485 = vmax.f32 %v1450, 0.0
      %v1486 = vmax.f32 %v1453, 0.0
      %v1487 = vmax.f32 %v1456, 0.0
      %v1488 = vmax.f32 %v1459, 0.0
      %v1489 = vmax.f32 %v1462, 0.0
      %v1490 = vmax.f32 %v1465, 0.0
      %v1491 = vmax.f32 %v1468, 0.0
      %v1492 = vmax.f32 %v1471, 0.0
      %v1493 = vmax.f32 %v1474, 0.0
      %v1494 = vmax.f32 %v1477, 0.0
      %s1495 = scalar_lea.vmem %s2, 768
      %v1496 = vld [vmem:[%s1495] sm:$0xff]
      %v1497 = vld [vmem:[%s1495 + $0x8] sm:$0xff]
      %v1498 = vld [vmem:[%s1495 + $0x10] sm:$0xff]
      %v1499 = vld [vmem:[%s1495 + $0x18] sm:$0xff]
      %v1500 = vld [vmem:[%s1495 + $0x20] sm:$0xff]
      %v1501 = vld [vmem:[%s1495 + $0x28] sm:$0xff]
      %v1502 = vld [vmem:[%s1495 + $0x30] sm:$0xff]
      %v1503 = vld [vmem:[%s1495 + $0x38] sm:$0xff]
      %v1504 = vld [vmem:[%s1495 + $0x40] sm:$0xff]
      %v1505 = vld [vmem:[%s1495 + $0x48] sm:$0xff]
      %v1506 = vld [vmem:[%s1495 + $0x50] sm:$0xff]
      %v1507 = vld [vmem:[%s1495 + $0x58] sm:$0xff]
      %v1508 = vld [vmem:[%s1495 + $0x60] sm:$0xff]
      %v1509 = vld [vmem:[%s1495 + $0x68] sm:$0xff]
      %v1510 = vld [vmem:[%s1495 + $0x70] sm:$0xff]
      %v1511 = vld [vmem:[%s1495 + $0x78] sm:$0xff]
      %v1512 = vld [vmem:[%s1495 + $0x80] sm:$0xff]
      %v1513 = vld [vmem:[%s1495 + $0x88] sm:$0xff]
      %v1514 = vld [vmem:[%s1495 + $0x90] sm:$0xff]
      %v1515 = vld [vmem:[%s1495 + $0x98] sm:$0xff]
      %v1516 = vld [vmem:[%s1495 + $0xa0] sm:$0xff]
      %v1517 = vld [vmem:[%s1495 + $0xa8] sm:$0xff]
      %v1518 = vld [vmem:[%s1495 + $0xb0] sm:$0xff]
      %v1519 = vld [vmem:[%s1495 + $0xb8] sm:$0xff]
      %v1520 = vld [vmem:[%s1495 + $0xc0] sm:$0xff]
      %v1521 = vld [vmem:[%s1495 + $0xc8] sm:$0xff]
      %v1522 = vld [vmem:[%s1495 + $0xd0] sm:$0xff]
      %v1523 = vld [vmem:[%s1495 + $0xd8] sm:$0xff]
      %v1524 = vld [vmem:[%s1495 + $0xe0] sm:$0xff]
      %v1525 = vld [vmem:[%s1495 + $0xe8] sm:$0xff]
      %v1526 = vld [vmem:[%s1495 + $0xf0] sm:$0xff]
      %v1527 = vld [vmem:[%s1495 + $0xf8] sm:$0xff]
      %v1528 = vld [vmem:[%s1495 + $0x100] sm:$0xff]
      %v1529 = vld [vmem:[%s1495 + $0x108] sm:$0xff]
      %v1530 = vld [vmem:[%s1495 + $0x110] sm:$0xff]
      %v1531 = vld [vmem:[%s1495 + $0x118] sm:$0xff]
      %v1532 = vld [vmem:[%s1495 + $0x120] sm:$0xff]
      %v1533 = vld [vmem:[%s1495 + $0x128] sm:$0xff]
      %v1534 = vld [vmem:[%s1495 + $0x130] sm:$0xff]
      %v1535 = vld [vmem:[%s1495 + $0x138] sm:$0xff]
      %v1536 = vld [vmem:[%s1495 + $0x140] sm:$0xff]
      %v1537 = vld [vmem:[%s1495 + $0x148] sm:$0xff]
      %v1538 = vld [vmem:[%s1495 + $0x150] sm:$0xff]
      %v1539 = vld [vmem:[%s1495 + $0x158] sm:$0xff]
      %v1540 = vld [vmem:[%s1495 + $0x160] sm:$0xff]
      %v1541 = vld [vmem:[%s1495 + $0x168] sm:$0xff]
      %v1542 = vld [vmem:[%s1495 + $0x170] sm:$0xff]
      %v1543 = vld [vmem:[%s1495 + $0x178] sm:$0xff]
      %v1544 = vrot.slane %v1479, 7
      %v1545 = vrot.slane %v1480, 7
      %v1546 = vrot.slane %v1481, 7
      %v1547 = vrot.slane %v1482, 7
      %v1548 = vrot.slane %v1483, 7
      %v1549 = vrot.slane %v1484, 7
      %v1550 = vrot.slane %v1485, 7
      %v1551 = vrot.slane %v1486, 7
      %v1552 = vrot.slane %v1487, 7
      %v1553 = vrot.slane %v1488, 7
      %v1554 = vrot.slane %v1489, 7
      %v1555 = vrot.slane %v1490, 7
      %v1556 = vrot.slane %v1491, 7
      %v1557 = vrot.slane %v1492, 7
      %v1558 = vrot.slane %v1493, 7
      %v1559 = vrot.slane %v1494, 7
      %v1560 = vsel %vm427, %v1558, %v1559
      %v1561 = vsel %vm427, %v1557, %v1558
      %v1562 = vsel %vm427, %v1556, %v1557
      %v1563 = vsel %vm427, %v1555, %v1556
      %v1564 = vsel %vm427, %v1554, %v1555
      %v1565 = vsel %vm427, %v1553, %v1554
      %v1566 = vsel %vm427, %v1552, %v1553
      %v1567 = vsel %vm427, %v1551, %v1552
      %v1568 = vsel %vm427, %v1550, %v1551
      %v1569 = vsel %vm427, %v1549, %v1550
      %v1570 = vsel %vm427, %v1548, %v1549
      %v1571 = vsel %vm427, %v1547, %v1548
      %v1572 = vsel %vm427, %v1546, %v1547
      %v1573 = vsel %vm427, %v1545, %v1546
      %v1574 = vsel %vm427, %v1544, %v1545
      %v1575 = vsel %vm427, %v1559, %v1544
      %v1576 = vsel %vm460, %v1479, %v1575
      %v1577 = vsel %vm461, %v1480, %v1574
      %v1578 = vsel %vm462, %v1481, %v1573
      %v1579 = vsel %vm463, %v1482, %v1572
      %v1580 = vsel %vm464, %v1483, %v1571
      %v1581 = vsel %vm465, %v1484, %v1570
      %v1582 = vsel %vm466, %v1485, %v1569
      %v1583 = vsel %vm467, %v1486, %v1568
      %v1584 = vsel %vm468, %v1487, %v1567
      %v1585 = vsel %vm469, %v1488, %v1566
      %v1586 = vsel %vm470, %v1489, %v1565
      %v1587 = vsel %vm471, %v1490, %v1564
      %v1588 = vsel %vm472, %v1491, %v1563
      %v1589 = vsel %vm473, %v1492, %v1562
      %v1590 = vsel %vm474, %v1493, %v1561
      %v1591 = vsel %vm475, %v1494, %v1560
      %v1592 = vrot.slane %v1479, 1
      %v1593 = vrot.slane %v1480, 1
      %v1594 = vrot.slane %v1481, 1
      %v1595 = vrot.slane %v1482, 1
      %v1596 = vrot.slane %v1483, 1
      %v1597 = vrot.slane %v1484, 1
      %v1598 = vrot.slane %v1485, 1
      %v1599 = vrot.slane %v1486, 1
      %v1600 = vrot.slane %v1487, 1
      %v1601 = vrot.slane %v1488, 1
      %v1602 = vrot.slane %v1489, 1
      %v1603 = vrot.slane %v1490, 1
      %v1604 = vrot.slane %v1491, 1
      %v1605 = vrot.slane %v1492, 1
      %v1606 = vrot.slane %v1493, 1
      %v1607 = vrot.slane %v1494, 1
      %v1608 = vsel %vm508, %v1606, %v1607
      %v1609 = vsel %vm508, %v1605, %v1606
      %v1610 = vsel %vm508, %v1604, %v1605
      %v1611 = vsel %vm508, %v1603, %v1604
      %v1612 = vsel %vm508, %v1602, %v1603
      %v1613 = vsel %vm508, %v1601, %v1602
      %v1614 = vsel %vm508, %v1600, %v1601
      %v1615 = vsel %vm508, %v1599, %v1600
      %v1616 = vsel %vm508, %v1598, %v1599
      %v1617 = vsel %vm508, %v1597, %v1598
      %v1618 = vsel %vm508, %v1596, %v1597
      %v1619 = vsel %vm508, %v1595, %v1596
      %v1620 = vsel %vm508, %v1594, %v1595
      %v1621 = vsel %vm508, %v1593, %v1594
      %v1622 = vsel %vm508, %v1592, %v1593
      %v1623 = vsel %vm508, %v1607, %v1592
      %v1624 = vsel %vm541, %v1479, %v1622
      %v1625 = vsel %vm542, %v1480, %v1621
      %v1626 = vsel %vm543, %v1481, %v1620
      %v1627 = vsel %vm544, %v1482, %v1619
      %v1628 = vsel %vm545, %v1483, %v1618
      %v1629 = vsel %vm546, %v1484, %v1617
      %v1630 = vsel %vm547, %v1485, %v1616
      %v1631 = vsel %vm548, %v1486, %v1615
      %v1632 = vsel %vm549, %v1487, %v1614
      %v1633 = vsel %vm550, %v1488, %v1613
      %v1634 = vsel %vm551, %v1489, %v1612
      %v1635 = vsel %vm552, %v1490, %v1611
      %v1636 = vsel %vm553, %v1491, %v1610
      %v1637 = vsel %vm554, %v1492, %v1609
      %v1638 = vsel %vm555, %v1493, %v1608
      %v1639 = vsel %vm556, %v1494, %v1623
      %1640 = vmatpush.msra.mxu0 %v1511
      %1641 = vmatpush.msra.mxu0 %v1510
      %1642 = vmatpush.msra.mxu0 %v1509
      %1643 = vmatpush.msra.mxu0 %v1508
      %1644 = vmatpush.msra.mxu0 %v1507
      %1645 = vmatpush.msra.mxu0 %v1506
      %1646 = vmatpush.msra.mxu0 %v1505
      %1647 = vmatpush.msra.mxu0 %v1504
      %1648 = vmatpush.msra.mxu0 %v1503
      %1649 = vmatpush.msra.mxu0 %v1502
      %1650 = vmatpush.msra.mxu0 %v1501
      %1651 = vmatpush.msra.mxu0 %v1500
      %1652 = vmatpush.msra.mxu0 %v1499
      %1653 = vmatpush.msra.mxu0 %v1498
      %1654 = vmatpush.msra.mxu0 %v1497
      %1655 = vmatpush.msra.mxu0 %v1496
      %1656 = vmatmul.f32.gmra.mxu0 %v1576
      %v1657 = vpop.f32.mrf.mxu0
      %v1658 = vadd.f32 0.0, %v1657
      %1659 = vmatmul.f32.gmra.mxu0 %v1577
      %v1660 = vpop.f32.mrf.mxu0
      %v1661 = vadd.f32 0.0, %v1660
      %1662 = vmatmul.f32.gmra.mxu0 %v1578
      %v1663 = vpop.f32.mrf.mxu0
      %v1664 = vadd.f32 0.0, %v1663
      %1665 = vmatmul.f32.gmra.mxu0 %v1579
      %v1666 = vpop.f32.mrf.mxu0
      %v1667 = vadd.f32 0.0, %v1666
      %1668 = vmatmul.f32.gmra.mxu0 %v1580
      %v1669 = vpop.f32.mrf.mxu0
      %v1670 = vadd.f32 0.0, %v1669
      %1671 = vmatmul.f32.gmra.mxu0 %v1581
      %v1672 = vpop.f32.mrf.mxu0
      %v1673 = vadd.f32 0.0, %v1672
      %1674 = vmatmul.f32.gmra.mxu0 %v1582
      %v1675 = vpop.f32.mrf.mxu0
      %v1676 = vadd.f32 0.0, %v1675
      %1677 = vmatmul.f32.gmra.mxu0 %v1583
      %v1678 = vpop.f32.mrf.mxu0
      %v1679 = vadd.f32 0.0, %v1678
      %1680 = vmatmul.f32.gmra.mxu0 %v1584
      %v1681 = vpop.f32.mrf.mxu0
      %v1682 = vadd.f32 0.0, %v1681
      %1683 = vmatmul.f32.gmra.mxu0 %v1585
      %v1684 = vpop.f32.mrf.mxu0
      %v1685 = vadd.f32 0.0, %v1684
      %1686 = vmatmul.f32.gmra.mxu0 %v1586
      %v1687 = vpop.f32.mrf.mxu0
      %v1688 = vadd.f32 0.0, %v1687
      %1689 = vmatmul.f32.gmra.mxu0 %v1587
      %v1690 = vpop.f32.mrf.mxu0
      %v1691 = vadd.f32 0.0, %v1690
      %1692 = vmatmul.f32.gmra.mxu0 %v1588
      %v1693 = vpop.f32.mrf.mxu0
      %v1694 = vadd.f32 0.0, %v1693
      %1695 = vmatmul.f32.gmra.mxu0 %v1589
      %v1696 = vpop.f32.mrf.mxu0
      %v1697 = vadd.f32 0.0, %v1696
      %1698 = vmatmul.f32.gmra.mxu0 %v1590
      %v1699 = vpop.f32.mrf.mxu0
      %v1700 = vadd.f32 0.0, %v1699
      %1701 = vmatmul.f32.gmra.mxu0 %v1591
      %v1702 = vpop.f32.mrf.mxu0
      %v1703 = vadd.f32 0.0, %v1702
      %1704 = vdwg.mxu0
      %1705 = vmatpush.msra.mxu0 %v1527
      %1706 = vmatpush.msra.mxu0 %v1526
      %1707 = vmatpush.msra.mxu0 %v1525
      %1708 = vmatpush.msra.mxu0 %v1524
      %1709 = vmatpush.msra.mxu0 %v1523
      %1710 = vmatpush.msra.mxu0 %v1522
      %1711 = vmatpush.msra.mxu0 %v1521
      %1712 = vmatpush.msra.mxu0 %v1520
      %1713 = vmatpush.msra.mxu0 %v1519
      %1714 = vmatpush.msra.mxu0 %v1518
      %1715 = vmatpush.msra.mxu0 %v1517
      %1716 = vmatpush.msra.mxu0 %v1516
      %1717 = vmatpush.msra.mxu0 %v1515
      %1718 = vmatpush.msra.mxu0 %v1514
      %1719 = vmatpush.msra.mxu0 %v1513
      %1720 = vmatpush.msra.mxu0 %v1512
      %1721 = vmatmul.f32.gmra.mxu0 %v1479
      %v1722 = vpop.f32.mrf.mxu0
      %v1723 = vadd.f32 %v1658, %v1722
      %1724 = vmatmul.f32.gmra.mxu0 %v1480
      %v1725 = vpop.f32.mrf.mxu0
      %v1726 = vadd.f32 %v1661, %v1725
      %1727 = vmatmul.f32.gmra.mxu0 %v1481
      %v1728 = vpop.f32.mrf.mxu0
      %v1729 = vadd.f32 %v1664, %v1728
      %1730 = vmatmul.f32.gmra.mxu0 %v1482
      %v1731 = vpop.f32.mrf.mxu0
      %v1732 = vadd.f32 %v1667, %v1731
      %1733 = vmatmul.f32.gmra.mxu0 %v1483
      %v1734 = vpop.f32.mrf.mxu0
      %v1735 = vadd.f32 %v1670, %v1734
      %1736 = vmatmul.f32.gmra.mxu0 %v1484
      %v1737 = vpop.f32.mrf.mxu0
      %v1738 = vadd.f32 %v1673, %v1737
      %1739 = vmatmul.f32.gmra.mxu0 %v1485
      %v1740 = vpop.f32.mrf.mxu0
      %v1741 = vadd.f32 %v1676, %v1740
      %1742 = vmatmul.f32.gmra.mxu0 %v1486
      %v1743 = vpop.f32.mrf.mxu0
      %v1744 = vadd.f32 %v1679, %v1743
      %1745 = vmatmul.f32.gmra.mxu0 %v1487
      %v1746 = vpop.f32.mrf.mxu0
      %v1747 = vadd.f32 %v1682, %v1746
      %1748 = vmatmul.f32.gmra.mxu0 %v1488
      %v1749 = vpop.f32.mrf.mxu0
      %v1750 = vadd.f32 %v1685, %v1749
      %1751 = vmatmul.f32.gmra.mxu0 %v1489
      %v1752 = vpop.f32.mrf.mxu0
      %v1753 = vadd.f32 %v1688, %v1752
      %1754 = vmatmul.f32.gmra.mxu0 %v1490
      %v1755 = vpop.f32.mrf.mxu0
      %v1756 = vadd.f32 %v1691, %v1755
      %1757 = vmatmul.f32.gmra.mxu0 %v1491
      %v1758 = vpop.f32.mrf.mxu0
      %v1759 = vadd.f32 %v1694, %v1758
      %1760 = vmatmul.f32.gmra.mxu0 %v1492
      %v1761 = vpop.f32.mrf.mxu0
      %v1762 = vadd.f32 %v1697, %v1761
      %1763 = vmatmul.f32.gmra.mxu0 %v1493
      %v1764 = vpop.f32.mrf.mxu0
      %v1765 = vadd.f32 %v1700, %v1764
      %1766 = vmatmul.f32.gmra.mxu0 %v1494
      %v1767 = vpop.f32.mrf.mxu0
      %v1768 = vadd.f32 %v1703, %v1767
      %1769 = vdwg.mxu0
      %1770 = vmatpush.msra.mxu0 %v1543
      %1771 = vmatpush.msra.mxu0 %v1542
      %1772 = vmatpush.msra.mxu0 %v1541
      %1773 = vmatpush.msra.mxu0 %v1540
      %1774 = vmatpush.msra.mxu0 %v1539
      %1775 = vmatpush.msra.mxu0 %v1538
      %1776 = vmatpush.msra.mxu0 %v1537
      %1777 = vmatpush.msra.mxu0 %v1536
      %1778 = vmatpush.msra.mxu0 %v1535
      %1779 = vmatpush.msra.mxu0 %v1534
      %1780 = vmatpush.msra.mxu0 %v1533
      %1781 = vmatpush.msra.mxu0 %v1532
      %1782 = vmatpush.msra.mxu0 %v1531
      %1783 = vmatpush.msra.mxu0 %v1530
      %1784 = vmatpush.msra.mxu0 %v1529
      %1785 = vmatpush.msra.mxu0 %v1528
      %1786 = vmatmul.f32.gmra.mxu0 %v1624
      %v1787 = vpop.f32.mrf.mxu0
      %v1788 = vadd.f32 %v1723, %v1787
      %1789 = vmatmul.f32.gmra.mxu0 %v1625
      %v1790 = vpop.f32.mrf.mxu0
      %v1791 = vadd.f32 %v1726, %v1790
      %1792 = vmatmul.f32.gmra.mxu0 %v1626
      %v1793 = vpop.f32.mrf.mxu0
      %v1794 = vadd.f32 %v1729, %v1793
      %1795 = vmatmul.f32.gmra.mxu0 %v1627
      %v1796 = vpop.f32.mrf.mxu0
      %v1797 = vadd.f32 %v1732, %v1796
      %1798 = vmatmul.f32.gmra.mxu0 %v1628
      %v1799 = vpop.f32.mrf.mxu0
      %v1800 = vadd.f32 %v1735, %v1799
      %1801 = vmatmul.f32.gmra.mxu0 %v1629
      %v1802 = vpop.f32.mrf.mxu0
      %v1803 = vadd.f32 %v1738, %v1802
      %1804 = vmatmul.f32.gmra.mxu0 %v1630
      %v1805 = vpop.f32.mrf.mxu0
      %v1806 = vadd.f32 %v1741, %v1805
      %1807 = vmatmul.f32.gmra.mxu0 %v1631
      %v1808 = vpop.f32.mrf.mxu0
      %v1809 = vadd.f32 %v1744, %v1808
      %1810 = vmatmul.f32.gmra.mxu0 %v1632
      %v1811 = vpop.f32.mrf.mxu0
      %v1812 = vadd.f32 %v1747, %v1811
      %1813 = vmatmul.f32.gmra.mxu0 %v1633
      %v1814 = vpop.f32.mrf.mxu0
      %v1815 = vadd.f32 %v1750, %v1814
      %1816 = vmatmul.f32.gmra.mxu0 %v1634
      %v1817 = vpop.f32.mrf.mxu0
      %v1818 = vadd.f32 %v1753, %v1817
      %1819 = vmatmul.f32.gmra.mxu0 %v1635
      %v1820 = vpop.f32.mrf.mxu0
      %v1821 = vadd.f32 %v1756, %v1820
      %1822 = vmatmul.f32.gmra.mxu0 %v1636
      %v1823 = vpop.f32.mrf.mxu0
      %v1824 = vadd.f32 %v1759, %v1823
      %1825 = vmatmul.f32.gmra.mxu0 %v1637
      %v1826 = vpop.f32.mrf.mxu0
      %v1827 = vadd.f32 %v1762, %v1826
      %1828 = vmatmul.f32.gmra.mxu0 %v1638
      %v1829 = vpop.f32.mrf.mxu0
      %v1830 = vadd.f32 %v1765, %v1829
      %1831 = vmatmul.f32.gmra.mxu0 %v1639
      %v1832 = vpop.f32.mrf.mxu0
      %v1833 = vadd.f32 %v1768, %v1832
      %1834 = vdwg.mxu0
      %v1835 = vmax.f32 %v1788, 0.0
      %v1836 = vmax.f32 %v1791, 0.0
      %v1837 = vmax.f32 %v1794, 0.0
      %v1838 = vmax.f32 %v1797, 0.0
      %v1839 = vmax.f32 %v1800, 0.0
      %v1840 = vmax.f32 %v1803, 0.0
      %v1841 = vmax.f32 %v1806, 0.0
      %v1842 = vmax.f32 %v1809, 0.0
      %v1843 = vmax.f32 %v1812, 0.0
      %v1844 = vmax.f32 %v1815, 0.0
      %v1845 = vmax.f32 %v1818, 0.0
      %v1846 = vmax.f32 %v1821, 0.0
      %v1847 = vmax.f32 %v1824, 0.0
      %v1848 = vmax.f32 %v1827, 0.0
      %v1849 = vmax.f32 %v1830, 0.0
      %v1850 = vmax.f32 %v1833, 0.0
      %v1851 = vld [vmem:[%s3] sm:$0xff]
      %v1852 = vld [vmem:[%s3 + $0x8] sm:$0xff]
      %v1853 = vld [vmem:[%s3 + $0x10] sm:$0xff]
      %v1854 = vld [vmem:[%s3 + $0x18] sm:$0xff]
      %v1855 = vld [vmem:[%s3 + $0x20] sm:$0xff]
      %v1856 = vld [vmem:[%s3 + $0x28] sm:$0xff]
      %v1857 = vld [vmem:[%s3 + $0x30] sm:$0xff]
      %v1858 = vld [vmem:[%s3 + $0x38] sm:$0xff]
      %v1859 = vld [vmem:[%s3 + $0x40] sm:$0xff]
      %v1860 = vld [vmem:[%s3 + $0x48] sm:$0xff]
      %v1861 = vld [vmem:[%s3 + $0x50] sm:$0xff]
      %v1862 = vld [vmem:[%s3 + $0x58] sm:$0xff]
      %v1863 = vld [vmem:[%s3 + $0x60] sm:$0xff]
      %v1864 = vld [vmem:[%s3 + $0x68] sm:$0xff]
      %v1865 = vld [vmem:[%s3 + $0x70] sm:$0xff]
      %v1866 = vld [vmem:[%s3 + $0x78] sm:$0xff]
      %v1867 = vld [vmem:[%s3 + $0x80] sm:$0xff]
      %v1868 = vld [vmem:[%s3 + $0x88] sm:$0xff]
      %v1869 = vld [vmem:[%s3 + $0x90] sm:$0xff]
      %v1870 = vld [vmem:[%s3 + $0x98] sm:$0xff]
      %v1871 = vld [vmem:[%s3 + $0xa0] sm:$0xff]
      %v1872 = vld [vmem:[%s3 + $0xa8] sm:$0xff]
      %v1873 = vld [vmem:[%s3 + $0xb0] sm:$0xff]
      %v1874 = vld [vmem:[%s3 + $0xb8] sm:$0xff]
      %v1875 = vld [vmem:[%s3 + $0xc0] sm:$0xff]
      %v1876 = vld [vmem:[%s3 + $0xc8] sm:$0xff]
      %v1877 = vld [vmem:[%s3 + $0xd0] sm:$0xff]
      %v1878 = vld [vmem:[%s3 + $0xd8] sm:$0xff]
      %v1879 = vld [vmem:[%s3 + $0xe0] sm:$0xff]
      %v1880 = vld [vmem:[%s3 + $0xe8] sm:$0xff]
      %v1881 = vld [vmem:[%s3 + $0xf0] sm:$0xff]
      %v1882 = vld [vmem:[%s3 + $0xf8] sm:$0xff]
      %v1883 = vld [vmem:[%s3 + $0x100] sm:$0xff]
      %v1884 = vld [vmem:[%s3 + $0x108] sm:$0xff]
      %v1885 = vld [vmem:[%s3 + $0x110] sm:$0xff]
      %v1886 = vld [vmem:[%s3 + $0x118] sm:$0xff]
      %v1887 = vld [vmem:[%s3 + $0x120] sm:$0xff]
      %v1888 = vld [vmem:[%s3 + $0x128] sm:$0xff]
      %v1889 = vld [vmem:[%s3 + $0x130] sm:$0xff]
      %v1890 = vld [vmem:[%s3 + $0x138] sm:$0xff]
      %v1891 = vld [vmem:[%s3 + $0x140] sm:$0xff]
      %v1892 = vld [vmem:[%s3 + $0x148] sm:$0xff]
      %v1893 = vld [vmem:[%s3 + $0x150] sm:$0xff]
      %v1894 = vld [vmem:[%s3 + $0x158] sm:$0xff]
      %v1895 = vld [vmem:[%s3 + $0x160] sm:$0xff]
      %v1896 = vld [vmem:[%s3 + $0x168] sm:$0xff]
      %v1897 = vld [vmem:[%s3 + $0x170] sm:$0xff]
      %v1898 = vld [vmem:[%s3 + $0x178] sm:$0xff]
      %v1899 = vrot.slane %v1835, 7
      %v1900 = vrot.slane %v1836, 7
      %v1901 = vrot.slane %v1837, 7
      %v1902 = vrot.slane %v1838, 7
      %v1903 = vrot.slane %v1839, 7
      %v1904 = vrot.slane %v1840, 7
      %v1905 = vrot.slane %v1841, 7
      %v1906 = vrot.slane %v1842, 7
      %v1907 = vrot.slane %v1843, 7
      %v1908 = vrot.slane %v1844, 7
      %v1909 = vrot.slane %v1845, 7
      %v1910 = vrot.slane %v1846, 7
      %v1911 = vrot.slane %v1847, 7
      %v1912 = vrot.slane %v1848, 7
      %v1913 = vrot.slane %v1849, 7
      %v1914 = vrot.slane %v1850, 7
      %v1915 = vsel %vm427, %v1913, %v1914
      %v1916 = vsel %vm427, %v1912, %v1913
      %v1917 = vsel %vm427, %v1911, %v1912
      %v1918 = vsel %vm427, %v1910, %v1911
      %v1919 = vsel %vm427, %v1909, %v1910
      %v1920 = vsel %vm427, %v1908, %v1909
      %v1921 = vsel %vm427, %v1907, %v1908
      %v1922 = vsel %vm427, %v1906, %v1907
      %v1923 = vsel %vm427, %v1905, %v1906
      %v1924 = vsel %vm427, %v1904, %v1905
      %v1925 = vsel %vm427, %v1903, %v1904
      %v1926 = vsel %vm427, %v1902, %v1903
      %v1927 = vsel %vm427, %v1901, %v1902
      %v1928 = vsel %vm427, %v1900, %v1901
      %v1929 = vsel %vm427, %v1899, %v1900
      %v1930 = vsel %vm427, %v1914, %v1899
      %v1931 = vsel %vm460, %v1835, %v1930
      %v1932 = vsel %vm461, %v1836, %v1929
      %v1933 = vsel %vm462, %v1837, %v1928
      %v1934 = vsel %vm463, %v1838, %v1927
      %v1935 = vsel %vm464, %v1839, %v1926
      %v1936 = vsel %vm465, %v1840, %v1925
      %v1937 = vsel %vm466, %v1841, %v1924
      %v1938 = vsel %vm467, %v1842, %v1923
      %v1939 = vsel %vm468, %v1843, %v1922
      %v1940 = vsel %vm469, %v1844, %v1921
      %v1941 = vsel %vm470, %v1845, %v1920
      %v1942 = vsel %vm471, %v1846, %v1919
      %v1943 = vsel %vm472, %v1847, %v1918
      %v1944 = vsel %vm473, %v1848, %v1917
      %v1945 = vsel %vm474, %v1849, %v1916
      %v1946 = vsel %vm475, %v1850, %v1915
      %v1947 = vrot.slane %v1835, 1
      %v1948 = vrot.slane %v1836, 1
      %v1949 = vrot.slane %v1837, 1
      %v1950 = vrot.slane %v1838, 1
      %v1951 = vrot.slane %v1839, 1
      %v1952 = vrot.slane %v1840, 1
      %v1953 = vrot.slane %v1841, 1
      %v1954 = vrot.slane %v1842, 1
      %v1955 = vrot.slane %v1843, 1
      %v1956 = vrot.slane %v1844, 1
      %v1957 = vrot.slane %v1845, 1
      %v1958 = vrot.slane %v1846, 1
      %v1959 = vrot.slane %v1847, 1
      %v1960 = vrot.slane %v1848, 1
      %v1961 = vrot.slane %v1849, 1
      %v1962 = vrot.slane %v1850, 1
      %v1963 = vsel %vm508, %v1961, %v1962
      %v1964 = vsel %vm508, %v1960, %v1961
      %v1965 = vsel %vm508, %v1959, %v1960
      %v1966 = vsel %vm508, %v1958, %v1959
      %v1967 = vsel %vm508, %v1957, %v1958
      %v1968 = vsel %vm508, %v1956, %v1957
      %v1969 = vsel %vm508, %v1955, %v1956
      %v1970 = vsel %vm508, %v1954, %v1955
      %v1971 = vsel %vm508, %v1953, %v1954
      %v1972 = vsel %vm508, %v1952, %v1953
      %v1973 = vsel %vm508, %v1951, %v1952
      %v1974 = vsel %vm508, %v1950, %v1951
      %v1975 = vsel %vm508, %v1949, %v1950
      %v1976 = vsel %vm508, %v1948, %v1949
      %v1977 = vsel %vm508, %v1947, %v1948
      %v1978 = vsel %vm508, %v1962, %v1947
      %v1979 = vsel %vm541, %v1835, %v1977
      %v1980 = vsel %vm542, %v1836, %v1976
      %v1981 = vsel %vm543, %v1837, %v1975
      %v1982 = vsel %vm544, %v1838, %v1974
      %v1983 = vsel %vm545, %v1839, %v1973
      %v1984 = vsel %vm546, %v1840, %v1972
      %v1985 = vsel %vm547, %v1841, %v1971
      %v1986 = vsel %vm548, %v1842, %v1970
      %v1987 = vsel %vm549, %v1843, %v1969
      %v1988 = vsel %vm550, %v1844, %v1968
      %v1989 = vsel %vm551, %v1845, %v1967
      %v1990 = vsel %vm552, %v1846, %v1966
      %v1991 = vsel %vm553, %v1847, %v1965
      %v1992 = vsel %vm554, %v1848, %v1964
      %v1993 = vsel %vm555, %v1849, %v1963
      %v1994 = vsel %vm556, %v1850, %v1978
      %1995 = vmatpush.msra.mxu0 %v1866
      %1996 = vmatpush.msra.mxu0 %v1865
      %1997 = vmatpush.msra.mxu0 %v1864
      %1998 = vmatpush.msra.mxu0 %v1863
      %1999 = vmatpush.msra.mxu0 %v1862
      %2000 = vmatpush.msra.mxu0 %v1861
      %2001 = vmatpush.msra.mxu0 %v1860
      %2002 = vmatpush.msra.mxu0 %v1859
      %2003 = vmatpush.msra.mxu0 %v1858
      %2004 = vmatpush.msra.mxu0 %v1857
      %2005 = vmatpush.msra.mxu0 %v1856
      %2006 = vmatpush.msra.mxu0 %v1855
      %2007 = vmatpush.msra.mxu0 %v1854
      %2008 = vmatpush.msra.mxu0 %v1853
      %2009 = vmatpush.msra.mxu0 %v1852
      %2010 = vmatpush.msra.mxu0 %v1851
      %2011 = vmatmul.f32.gmra.mxu0 %v1931
      %v2012 = vpop.f32.mrf.mxu0
      %v2013 = vadd.f32 0.0, %v2012
      %2014 = vmatmul.f32.gmra.mxu0 %v1932
      %v2015 = vpop.f32.mrf.mxu0
      %v2016 = vadd.f32 0.0, %v2015
      %2017 = vmatmul.f32.gmra.mxu0 %v1933
      %v2018 = vpop.f32.mrf.mxu0
      %v2019 = vadd.f32 0.0, %v2018
      %2020 = vmatmul.f32.gmra.mxu0 %v1934
      %v2021 = vpop.f32.mrf.mxu0
      %v2022 = vadd.f32 0.0, %v2021
      %2023 = vmatmul.f32.gmra.mxu0 %v1935
      %v2024 = vpop.f32.mrf.mxu0
      %v2025 = vadd.f32 0.0, %v2024
      %2026 = vmatmul.f32.gmra.mxu0 %v1936
      %v2027 = vpop.f32.mrf.mxu0
      %v2028 = vadd.f32 0.0, %v2027
      %2029 = vmatmul.f32.gmra.mxu0 %v1937
      %v2030 = vpop.f32.mrf.mxu0
      %v2031 = vadd.f32 0.0, %v2030
      %2032 = vmatmul.f32.gmra.mxu0 %v1938
      %v2033 = vpop.f32.mrf.mxu0
      %v2034 = vadd.f32 0.0, %v2033
      %2035 = vmatmul.f32.gmra.mxu0 %v1939
      %v2036 = vpop.f32.mrf.mxu0
      %v2037 = vadd.f32 0.0, %v2036
      %2038 = vmatmul.f32.gmra.mxu0 %v1940
      %v2039 = vpop.f32.mrf.mxu0
      %v2040 = vadd.f32 0.0, %v2039
      %2041 = vmatmul.f32.gmra.mxu0 %v1941
      %v2042 = vpop.f32.mrf.mxu0
      %v2043 = vadd.f32 0.0, %v2042
      %2044 = vmatmul.f32.gmra.mxu0 %v1942
      %v2045 = vpop.f32.mrf.mxu0
      %v2046 = vadd.f32 0.0, %v2045
      %2047 = vmatmul.f32.gmra.mxu0 %v1943
      %v2048 = vpop.f32.mrf.mxu0
      %v2049 = vadd.f32 0.0, %v2048
      %2050 = vmatmul.f32.gmra.mxu0 %v1944
      %v2051 = vpop.f32.mrf.mxu0
      %v2052 = vadd.f32 0.0, %v2051
      %2053 = vmatmul.f32.gmra.mxu0 %v1945
      %v2054 = vpop.f32.mrf.mxu0
      %v2055 = vadd.f32 0.0, %v2054
      %2056 = vmatmul.f32.gmra.mxu0 %v1946
      %v2057 = vpop.f32.mrf.mxu0
      %v2058 = vadd.f32 0.0, %v2057
      %2059 = vdwg.mxu0
      %2060 = vmatpush.msra.mxu0 %v1882
      %2061 = vmatpush.msra.mxu0 %v1881
      %2062 = vmatpush.msra.mxu0 %v1880
      %2063 = vmatpush.msra.mxu0 %v1879
      %2064 = vmatpush.msra.mxu0 %v1878
      %2065 = vmatpush.msra.mxu0 %v1877
      %2066 = vmatpush.msra.mxu0 %v1876
      %2067 = vmatpush.msra.mxu0 %v1875
      %2068 = vmatpush.msra.mxu0 %v1874
      %2069 = vmatpush.msra.mxu0 %v1873
      %2070 = vmatpush.msra.mxu0 %v1872
      %2071 = vmatpush.msra.mxu0 %v1871
      %2072 = vmatpush.msra.mxu0 %v1870
      %2073 = vmatpush.msra.mxu0 %v1869
      %2074 = vmatpush.msra.mxu0 %v1868
      %2075 = vmatpush.msra.mxu0 %v1867
      %2076 = vmatmul.f32.gmra.mxu0 %v1835
      %v2077 = vpop.f32.mrf.mxu0
      %v2078 = vadd.f32 %v2013, %v2077
      %2079 = vmatmul.f32.gmra.mxu0 %v1836
      %v2080 = vpop.f32.mrf.mxu0
      %v2081 = vadd.f32 %v2016, %v2080
      %2082 = vmatmul.f32.gmra.mxu0 %v1837
      %v2083 = vpop.f32.mrf.mxu0
      %v2084 = vadd.f32 %v2019, %v2083
      %2085 = vmatmul.f32.gmra.mxu0 %v1838
      %v2086 = vpop.f32.mrf.mxu0
      %v2087 = vadd.f32 %v2022, %v2086
      %2088 = vmatmul.f32.gmra.mxu0 %v1839
      %v2089 = vpop.f32.mrf.mxu0
      %v2090 = vadd.f32 %v2025, %v2089
      %2091 = vmatmul.f32.gmra.mxu0 %v1840
      %v2092 = vpop.f32.mrf.mxu0
      %v2093 = vadd.f32 %v2028, %v2092
      %2094 = vmatmul.f32.gmra.mxu0 %v1841
      %v2095 = vpop.f32.mrf.mxu0
      %v2096 = vadd.f32 %v2031, %v2095
      %2097 = vmatmul.f32.gmra.mxu0 %v1842
      %v2098 = vpop.f32.mrf.mxu0
      %v2099 = vadd.f32 %v2034, %v2098
      %2100 = vmatmul.f32.gmra.mxu0 %v1843
      %v2101 = vpop.f32.mrf.mxu0
      %v2102 = vadd.f32 %v2037, %v2101
      %2103 = vmatmul.f32.gmra.mxu0 %v1844
      %v2104 = vpop.f32.mrf.mxu0
      %v2105 = vadd.f32 %v2040, %v2104
      %2106 = vmatmul.f32.gmra.mxu0 %v1845
      %v2107 = vpop.f32.mrf.mxu0
      %v2108 = vadd.f32 %v2043, %v2107
      %2109 = vmatmul.f32.gmra.mxu0 %v1846
      %v2110 = vpop.f32.mrf.mxu0
      %v2111 = vadd.f32 %v2046, %v2110
      %2112 = vmatmul.f32.gmra.mxu0 %v1847
      %v2113 = vpop.f32.mrf.mxu0
      %v2114 = vadd.f32 %v2049, %v2113
      %2115 = vmatmul.f32.gmra.mxu0 %v1848
      %v2116 = vpop.f32.mrf.mxu0
      %v2117 = vadd.f32 %v2052, %v2116
      %2118 = vmatmul.f32.gmra.mxu0 %v1849
      %v2119 = vpop.f32.mrf.mxu0
      %v2120 = vadd.f32 %v2055, %v2119
      %2121 = vmatmul.f32.gmra.mxu0 %v1850
      %v2122 = vpop.f32.mrf.mxu0
      %v2123 = vadd.f32 %v2058, %v2122
      %2124 = vdwg.mxu0
      %2125 = vmatpush.msra.mxu0 %v1898
      %2126 = vmatpush.msra.mxu0 %v1897
      %2127 = vmatpush.msra.mxu0 %v1896
      %2128 = vmatpush.msra.mxu0 %v1895
      %2129 = vmatpush.msra.mxu0 %v1894
      %2130 = vmatpush.msra.mxu0 %v1893
      %2131 = vmatpush.msra.mxu0 %v1892
      %2132 = vmatpush.msra.mxu0 %v1891
      %2133 = vmatpush.msra.mxu0 %v1890
      %2134 = vmatpush.msra.mxu0 %v1889
      %2135 = vmatpush.msra.mxu0 %v1888
      %2136 = vmatpush.msra.mxu0 %v1887
      %2137 = vmatpush.msra.mxu0 %v1886
      %2138 = vmatpush.msra.mxu0 %v1885
      %2139 = vmatpush.msra.mxu0 %v1884
      %2140 = vmatpush.msra.mxu0 %v1883
      %2141 = vmatmul.f32.gmra.mxu0 %v1979
      %v2142 = vpop.f32.mrf.mxu0
      %v2143 = vadd.f32 %v2078, %v2142
      %2144 = vmatmul.f32.gmra.mxu0 %v1980
      %v2145 = vpop.f32.mrf.mxu0
      %v2146 = vadd.f32 %v2081, %v2145
      %2147 = vmatmul.f32.gmra.mxu0 %v1981
      %v2148 = vpop.f32.mrf.mxu0
      %v2149 = vadd.f32 %v2084, %v2148
      %2150 = vmatmul.f32.gmra.mxu0 %v1982
      %v2151 = vpop.f32.mrf.mxu0
      %v2152 = vadd.f32 %v2087, %v2151
      %2153 = vmatmul.f32.gmra.mxu0 %v1983
      %v2154 = vpop.f32.mrf.mxu0
      %v2155 = vadd.f32 %v2090, %v2154
      %2156 = vmatmul.f32.gmra.mxu0 %v1984
      %v2157 = vpop.f32.mrf.mxu0
      %v2158 = vadd.f32 %v2093, %v2157
      %2159 = vmatmul.f32.gmra.mxu0 %v1985
      %v2160 = vpop.f32.mrf.mxu0
      %v2161 = vadd.f32 %v2096, %v2160
      %2162 = vmatmul.f32.gmra.mxu0 %v1986
      %v2163 = vpop.f32.mrf.mxu0
      %v2164 = vadd.f32 %v2099, %v2163
      %2165 = vmatmul.f32.gmra.mxu0 %v1987
      %v2166 = vpop.f32.mrf.mxu0
      %v2167 = vadd.f32 %v2102, %v2166
      %2168 = vmatmul.f32.gmra.mxu0 %v1988
      %v2169 = vpop.f32.mrf.mxu0
      %v2170 = vadd.f32 %v2105, %v2169
      %2171 = vmatmul.f32.gmra.mxu0 %v1989
      %v2172 = vpop.f32.mrf.mxu0
      %v2173 = vadd.f32 %v2108, %v2172
      %2174 = vmatmul.f32.gmra.mxu0 %v1990
      %v2175 = vpop.f32.mrf.mxu0
      %v2176 = vadd.f32 %v2111, %v2175
      %2177 = vmatmul.f32.gmra.mxu0 %v1991
      %v2178 = vpop.f32.mrf.mxu0
      %v2179 = vadd.f32 %v2114, %v2178
      %2180 = vmatmul.f32.gmra.mxu0 %v1992
      %v2181 = vpop.f32.mrf.mxu0
      %v2182 = vadd.f32 %v2117, %v2181
      %2183 = vmatmul.f32.gmra.mxu0 %v1993
      %v2184 = vpop.f32.mrf.mxu0
      %v2185 = vadd.f32 %v2120, %v2184
      %2186 = vmatmul.f32.gmra.mxu0 %v1994
      %v2187 = vpop.f32.mrf.mxu0
      %v2188 = vadd.f32 %v2123, %v2187
      %2189 = vdwg.mxu0
      %v2190 = vmax.f32 %v2143, 0.0
      %v2191 = vmax.f32 %v2146, 0.0
      %v2192 = vmax.f32 %v2149, 0.0
      %v2193 = vmax.f32 %v2152, 0.0
      %v2194 = vmax.f32 %v2155, 0.0
      %v2195 = vmax.f32 %v2158, 0.0
      %v2196 = vmax.f32 %v2161, 0.0
      %v2197 = vmax.f32 %v2164, 0.0
      %v2198 = vmax.f32 %v2167, 0.0
      %v2199 = vmax.f32 %v2170, 0.0
      %v2200 = vmax.f32 %v2173, 0.0
      %v2201 = vmax.f32 %v2176, 0.0
      %v2202 = vmax.f32 %v2179, 0.0
      %v2203 = vmax.f32 %v2182, 0.0
      %v2204 = vmax.f32 %v2185, 0.0
      %v2205 = vmax.f32 %v2188, 0.0
      %v2206 = vrot.slane %v2190, 1
      %v2207 = vrot.slane %v2191, 1
      %v2208 = vrot.slane %v2192, 1
      %v2209 = vrot.slane %v2193, 1
      %v2210 = vrot.slane %v2194, 1
      %v2211 = vrot.slane %v2195, 1
      %v2212 = vrot.slane %v2196, 1
      %v2213 = vrot.slane %v2197, 1
      %v2214 = vrot.slane %v2198, 1
      %v2215 = vrot.slane %v2199, 1
      %v2216 = vrot.slane %v2200, 1
      %v2217 = vrot.slane %v2201, 1
      %v2218 = vrot.slane %v2202, 1
      %v2219 = vrot.slane %v2203, 1
      %v2220 = vrot.slane %v2204, 1
      %v2221 = vrot.slane %v2205, 1
      %v2222 = vsel %vm508, %v2220, %v2221
      %v2223 = vsel %vm508, %v2219, %v2220
      %v2224 = vsel %vm508, %v2218, %v2219
      %v2225 = vsel %vm508, %v2217, %v2218
      %v2226 = vsel %vm508, %v2216, %v2217
      %v2227 = vsel %vm508, %v2215, %v2216
      %v2228 = vsel %vm508, %v2214, %v2215
      %v2229 = vsel %vm508, %v2213, %v2214
      %v2230 = vsel %vm508, %v2212, %v2213
      %v2231 = vsel %vm508, %v2211, %v2212
      %v2232 = vsel %vm508, %v2210, %v2211
      %v2233 = vsel %vm508, %v2209, %v2210
      %v2234 = vsel %vm508, %v2208, %v2209
      %v2235 = vsel %vm508, %v2207, %v2208
      %v2236 = vsel %vm508, %v2206, %v2207
      %v2237 = vsel %vm508, %v2221, %v2206
      %v2238 = vmax.f32 %v2190, %v2236
      %v2239 = vmax.f32 %v2191, %v2235
      %v2240 = vmax.f32 %v2192, %v2234
      %v2241 = vmax.f32 %v2193, %v2233
      %v2242 = vmax.f32 %v2194, %v2232
      %v2243 = vmax.f32 %v2195, %v2231
      %v2244 = vmax.f32 %v2196, %v2230
      %v2245 = vmax.f32 %v2197, %v2229
      %v2246 = vmax.f32 %v2198, %v2228
      %v2247 = vmax.f32 %v2199, %v2227
      %v2248 = vmax.f32 %v2200, %v2226
      %v2249 = vmax.f32 %v2201, %v2225
      %v2250 = vmax.f32 %v2202, %v2224
      %v2251 = vmax.f32 %v2203, %v2223
      %v2252 = vmax.f32 %v2204, %v2222
      %v2253 = vmax.f32 %v2205, %v2237
      %2254 = vrot.lane.b32.xlu0 %v2238, 120
      %v2255 = vpop.permute.xlu0 %2254
      %2256 = vrot.lane.b32.xlu0 %v2239, 120
      %v2257 = vpop.permute.xlu0 %2256
      %2258 = vrot.lane.b32.xlu0 %v2240, 120
      %v2259 = vpop.permute.xlu0 %2258
      %2260 = vrot.lane.b32.xlu0 %v2241, 120
      %v2261 = vpop.permute.xlu0 %2260
      %2262 = vrot.lane.b32.xlu0 %v2242, 120
      %v2263 = vpop.permute.xlu0 %2262
      %2264 = vrot.lane.b32.xlu0 %v2243, 120
      %v2265 = vpop.permute.xlu0 %2264
      %2266 = vrot.lane.b32.xlu0 %v2244, 120
      %v2267 = vpop.permute.xlu0 %2266
      %2268 = vrot.lane.b32.xlu0 %v2245, 120
      %v2269 = vpop.permute.xlu0 %2268
      %2270 = vrot.lane.b32.xlu0 %v2246, 120
      %v2271 = vpop.permute.xlu0 %2270
      %2272 = vrot.lane.b32.xlu0 %v2247, 120
      %v2273 = vpop.permute.xlu0 %2272
      %2274 = vrot.lane.b32.xlu0 %v2248, 120
      %v2275 = vpop.permute.xlu0 %2274
      %2276 = vrot.lane.b32.xlu0 %v2249, 120
      %v2277 = vpop.permute.xlu0 %2276
      %2278 = vrot.lane.b32.xlu0 %v2250, 120
      %v2279 = vpop.permute.xlu0 %2278
      %2280 = vrot.lane.b32.xlu0 %v2251, 120
      %v2281 = vpop.permute.xlu0 %2280
      %2282 = vrot.lane.b32.xlu0 %v2252, 120
      %v2283 = vpop.permute.xlu0 %2282
      %2284 = vrot.lane.b32.xlu0 %v2253, 120
      %v2285 = vpop.permute.xlu0 %2284
      %v2286 = vmax.f32 %v2238, %v2255
      %v2287 = vmax.f32 %v2239, %v2257
      %v2288 = vmax.f32 %v2240, %v2259
      %v2289 = vmax.f32 %v2241, %v2261
      %v2290 = vmax.f32 %v2242, %v2263
      %v2291 = vmax.f32 %v2243, %v2265
      %v2292 = vmax.f32 %v2244, %v2267
      %v2293 = vmax.f32 %v2245, %v2269
      %v2294 = vmax.f32 %v2246, %v2271
      %v2295 = vmax.f32 %v2247, %v2273
      %v2296 = vmax.f32 %v2248, %v2275
      %v2297 = vmax.f32 %v2249, %v2277
      %v2298 = vmax.f32 %v2250, %v2279
      %v2299 = vmax.f32 %v2251, %v2281
      %v2300 = vmax.f32 %v2252, %v2283
      %v2301 = vmax.f32 %v2253, %v2285
      %v2302 = vld [vmem:[%s4] sm:$0xff]
      %v2303 = vld [vmem:[%s4 + $0x8] sm:$0xff]
      %v2304 = vld [vmem:[%s4 + $0x10] sm:$0xff]
      %v2305 = vld [vmem:[%s4 + $0x18] sm:$0xff]
      %v2306 = vld [vmem:[%s4 + $0x20] sm:$0xff]
      %v2307 = vld [vmem:[%s4 + $0x28] sm:$0xff]
      %v2308 = vld [vmem:[%s4 + $0x30] sm:$0xff]
      %v2309 = vld [vmem:[%s4 + $0x38] sm:$0xff]
      %v2310 = vld [vmem:[%s4 + $0x40] sm:$0xff]
      %v2311 = vld [vmem:[%s4 + $0x48] sm:$0xff]
      %v2312 = vld [vmem:[%s4 + $0x50] sm:$0xff]
      %v2313 = vld [vmem:[%s4 + $0x58] sm:$0xff]
      %v2314 = vld [vmem:[%s4 + $0x60] sm:$0xff]
      %v2315 = vld [vmem:[%s4 + $0x68] sm:$0xff]
      %v2316 = vld [vmem:[%s4 + $0x70] sm:$0xff]
      %v2317 = vld [vmem:[%s4 + $0x78] sm:$0xff]
      %2318 = vmatpush.msra.mxu0 %v2317
      %2319 = vmatpush.msra.mxu0 %v2316
      %2320 = vmatpush.msra.mxu0 %v2315
      %2321 = vmatpush.msra.mxu0 %v2314
      %2322 = vmatpush.msra.mxu0 %v2313
      %2323 = vmatpush.msra.mxu0 %v2312
      %2324 = vmatpush.msra.mxu0 %v2311
      %2325 = vmatpush.msra.mxu0 %v2310
      %2326 = vmatpush.msra.mxu0 %v2309
      %2327 = vmatpush.msra.mxu0 %v2308
      %2328 = vmatpush.msra.mxu0 %v2307
      %2329 = vmatpush.msra.mxu0 %v2306
      %2330 = vmatpush.msra.mxu0 %v2305
      %2331 = vmatpush.msra.mxu0 %v2304
      %2332 = vmatpush.msra.mxu0 %v2303
      %2333 = vmatpush.msra.mxu0 %v2302
      %2334 = vmatmul.f32.gmra.mxu0 %v2286
      %v2335 = vpop.f32.mrf.mxu0
      %v2336 = vadd.f32 0.0, %v2335
      %2337 = vmatmul.f32.gmra.mxu0 %v2287
      %v2338 = vpop.f32.mrf.mxu0
      %v2339 = vadd.f32 0.0, %v2338
      %2340 = vmatmul.f32.gmra.mxu0 %v2288
      %v2341 = vpop.f32.mrf.mxu0
      %v2342 = vadd.f32 0.0, %v2341
      %2343 = vmatmul.f32.gmra.mxu0 %v2289
      %v2344 = vpop.f32.mrf.mxu0
      %v2345 = vadd.f32 0.0, %v2344
      %2346 = vmatmul.f32.gmra.mxu0 %v2290
      %v2347 = vpop.f32.mrf.mxu0
      %v2348 = vadd.f32 0.0, %v2347
      %2349 = vmatmul.f32.gmra.mxu0 %v2291
      %v2350 = vpop.f32.mrf.mxu0
      %v2351 = vadd.f32 0.0, %v2350
      %2352 = vmatmul.f32.gmra.mxu0 %v2292
      %v2353 = vpop.f32.mrf.mxu0
      %v2354 = vadd.f32 0.0, %v2353
      %2355 = vmatmul.f32.gmra.mxu0 %v2293
      %v2356 = vpop.f32.mrf.mxu0
      %v2357 = vadd.f32 0.0, %v2356
      %2358 = vmatmul.f32.gmra.mxu0 %v2294
      %v2359 = vpop.f32.mrf.mxu0
      %v2360 = vadd.f32 0.0, %v2359
      %2361 = vmatmul.f32.gmra.mxu0 %v2295
      %v2362 = vpop.f32.mrf.mxu0
      %v2363 = vadd.f32 0.0, %v2362
      %2364 = vmatmul.f32.gmra.mxu0 %v2296
      %v2365 = vpop.f32.mrf.mxu0
      %v2366 = vadd.f32 0.0, %v2365
      %2367 = vmatmul.f32.gmra.mxu0 %v2297
      %v2368 = vpop.f32.mrf.mxu0
      %v2369 = vadd.f32 0.0, %v2368
      %2370 = vmatmul.f32.gmra.mxu0 %v2298
      %v2371 = vpop.f32.mrf.mxu0
      %v2372 = vadd.f32 0.0, %v2371
      %2373 = vmatmul.f32.gmra.mxu0 %v2299
      %v2374 = vpop.f32.mrf.mxu0
      %v2375 = vadd.f32 0.0, %v2374
      %2376 = vmatmul.f32.gmra.mxu0 %v2300
      %v2377 = vpop.f32.mrf.mxu0
      %v2378 = vadd.f32 0.0, %v2377
      %2379 = vmatmul.f32.gmra.mxu0 %v2301
      %v2380 = vpop.f32.mrf.mxu0
      %v2381 = vadd.f32 0.0, %v2380
      %2382 = vdwg.mxu0
      %v2383 = vld [vmem:[%s5] sm:$0xff]
      %v2384 = vld [vmem:[%s5 + $0x8] sm:$0xff]
      %v2385 = vld [vmem:[%s5 + $0x10] sm:$0xff]
      %v2386 = vld [vmem:[%s5 + $0x18] sm:$0xff]
      %2387 = vmatpush.msra.mxu0 %v2381
      %2388 = vmatpush.msra.mxu0 %v2378
      %2389 = vmatpush.msra.mxu0 %v2375
      %2390 = vmatpush.msra.mxu0 %v2372
      %2391 = vmatpush.msra.mxu0 %v2369
      %2392 = vmatpush.msra.mxu0 %v2366
      %2393 = vmatpush.msra.mxu0 %v2363
      %2394 = vmatpush.msra.mxu0 %v2360
      %2395 = vmatpush.msra.mxu0 %v2357
      %2396 = vmatpush.msra.mxu0 %v2354
      %2397 = vmatpush.msra.mxu0 %v2351
      %2398 = vmatpush.msra.mxu0 %v2348
      %2399 = vmatpush.msra.mxu0 %v2345
      %2400 = vmatpush.msra.mxu0 %v2342
      %2401 = vmatpush.msra.mxu0 %v2339
      %2402 = vmatpush.msra.mxu0 %v2336
      %2403 = vmatmul.f32.gmra.mxu0 %v2383
      %v2404 = vpop.f32.mrf.mxu0
      %v2405 = vadd.f32 0.0, %v2404
      %2406 = vmatmul.f32.gmra.mxu0 %v2384
      %v2407 = vpop.f32.mrf.mxu0
      %v2408 = vadd.f32 0.0, %v2407
      %2409 = vmatmul.f32.gmra.mxu0 %v2385
      %v2410 = vpop.f32.mrf.mxu0
      %v2411 = vadd.f32 0.0, %v2410
      %2412 = vmatmul.f32.gmra.mxu0 %v2386
      %v2413 = vpop.f32.mrf.mxu0
      %v2414 = vadd.f32 0.0, %v2413
      %2415 = vdwg.mxu0
      %v2416 = vld [vmem:[%s6] sm:$0xff]
      %v2417 = vld [vmem:[%s6 + $0x8] sm:$0xff]
      %v2418 = vld [vmem:[%s6 + $0x10] sm:$0xff]
      %v2419 = vld [vmem:[%s6 + $0x18] sm:$0xff]
      %2420 = vmatpush.msra.mxu0 %v2381
      %2421 = vmatpush.msra.mxu0 %v2378
      %2422 = vmatpush.msra.mxu0 %v2375
      %2423 = vmatpush.msra.mxu0 %v2372
      %2424 = vmatpush.msra.mxu0 %v2369
      %2425 = vmatpush.msra.mxu0 %v2366
      %2426 = vmatpush.msra.mxu0 %v2363
      %2427 = vmatpush.msra.mxu0 %v2360
      %2428 = vmatpush.msra.mxu0 %v2357
      %2429 = vmatpush.msra.mxu0 %v2354
      %2430 = vmatpush.msra.mxu0 %v2351
      %2431 = vmatpush.msra.mxu0 %v2348
      %2432 = vmatpush.msra.mxu0 %v2345
      %2433 = vmatpush.msra.mxu0 %v2342
      %2434 = vmatpush.msra.mxu0 %v2339
      %2435 = vmatpush.msra.mxu0 %v2336
      %2436 = vmatmul.f32.gmra.mxu0 %v2416
      %v2437 = vpop.f32.mrf.mxu0
      %v2438 = vadd.f32 0.0, %v2437
      %2439 = vmatmul.f32.gmra.mxu0 %v2417
      %v2440 = vpop.f32.mrf.mxu0
      %v2441 = vadd.f32 0.0, %v2440
      %2442 = vmatmul.f32.gmra.mxu0 %v2418
      %v2443 = vpop.f32.mrf.mxu0
      %v2444 = vadd.f32 0.0, %v2443
      %2445 = vmatmul.f32.gmra.mxu0 %v2419
      %v2446 = vpop.f32.mrf.mxu0
      %v2447 = vadd.f32 0.0, %v2446
      %2448 = vdwg.mxu0
      %2453 = vrot.lane.b32.xlu0 %v2438, 64
      %v2454 = vpop.permute.xlu0 %2453
      %2455 = vrot.lane.b32.xlu0 %v2441, 64
      %v2456 = vpop.permute.xlu0 %2455
      %2457 = vrot.lane.b32.xlu0 %v2444, 64
      %v2458 = vpop.permute.xlu0 %2457
      %2459 = vrot.lane.b32.xlu0 %v2447, 64
      %v2460 = vpop.permute.xlu0 %2459
      %vm2465 = vcmask 523264
      %v2466 = vsel %vm2465, %v2405, %v2454
      %v2467 = vsel %vm2465, %v2408, %v2456
      %v2468 = vsel %vm2465, %v2411, %v2458
      %v2469 = vsel %vm2465, %v2414, %v2460
      %2470 = vst [vmem:[%s280] sm:$0xff] %v2466
      %2471 = vst [vmem:[%s280 + $0x8] sm:$0xff] %v2467
      %2472 = vst [vmem:[%s280 + $0x10] sm:$0xff] %v2468
      %2473 = vst [vmem:[%s280 + $0x18] sm:$0xff] %v2469
      %s2474 = smul.u32 4, %s18
      %p2475 = scmp.lt.s32.totalorder %s2474, 7
      %s2476 = scalar_select %p2475, %s2474, 7
      %s2477 = smul.addr %s2476, 8
      %s2478 = scalar_lea.vmem %s7, %s2477
      // Predicated region
      $region49: #{forward.1} parent=47 // pred_check
        %p2479 = pneg %p188
      $region50: #{forward.1} parent=47 // pred_check_branch
        %2481 = sbr.rel (%p2479) target = $region52
      $region51: #{forward.1} parent=47 // pred_region
        %s2482 = smul.u32 4, %s18
      $region52: #{forward.1} parent=47 // pred_fallthru
        _
    $region48: #{forward.1} parent=5 // pred_fallthru
      _
    %p2483 = scmp.le.s32.totalorder 2, %s13
    // Predicated region
    $region53: #{forward.1} parent=5 // pred_check
      %p2484 = pneg %p2483
    $region54: #{forward.1} parent=5 // pred_check_branch
      %2486 = sbr.rel (%p2484) target = $region56
    $region55: #{forward.1} parent=5 // pred_region
      %s2487 = ssub.s32 %s13, 2
      // Predicated region
      $region57: #{forward.1} parent=55 // pred_check
        %p2488 = pneg %p194
      $region58: #{forward.1} parent=55 // pred_check_branch
        %2490 = sbr.rel (%p2488) target = $region60
      $region59: #{forward.1} parent=55 // pred_region
        %s2491 = smul.u32 4, %s19
        %p2492 = scmp.lt.s32.totalorder %s2491, 7
        %s2493 = scalar_select %p2492, %s2491, 7
        %s2494 = smul.addr %s2493, 8
        %s2495 = scalar_lea.vmem %s7, %s2494
      $region60: #{forward.1} parent=55 // pred_fallthru
        _
    $region56: #{forward.1} parent=5 // pred_fallthru
      _
  $region6: #{forward.1} parent=0 // loop_footer
    %s17 = sadd.s32 1, %s13
  $region7: #{forward.1} parent=0 // loop_footer_branch
    %12 = sbr.rel target = $region3
  $region8: #{forward.1} parent=0 // loop_exit
    _

</llo_original>
